<compile_context>
chip_gen: v7x
topology: tpu7x:2x2x1
jax: 0.10.0
libtpu: 0.0.40
codegen_flags: <defaults>
</compile_context>

<pallas_src>
import functools

import jax
import jax.numpy as jnp
import numpy as np
from jax import lax
from jax.experimental import pallas as pl
from jax.experimental.pallas import tpu as pltpu


def dan_kernel(block_n, alpha_ref, x_ref, wqkv_ref, bqkv_ref, o_ref, logits_ref):
    TB, N, D = x_ref.shape                  # static block shape
    CN = block_n
    n_chunks = N // CN
    alpha = alpha_ref[0]                    # f32 scalar from SMEM (prefetched)

    # Fused weights (bf16 for the MXU) and f32 biases; static lane-aligned slices.
    w_qk = wqkv_ref[:, :2 * D]              # (D, 2D) bf16
    w_v = wqkv_ref[:, 2 * D:]               # (D, D)  bf16
    b_q = bqkv_ref[:, :D]                   # (1, D)  f32
    b_k = bqkv_ref[:, D:2 * D]              # (1, D)  f32
    b_v = bqkv_ref[:, 2 * D:]               # (1, D)  f32

    for b in range(TB):                     # TB is small & static -> clean unroll
        # ---- Pass 1: logits = Q^T K, accumulated over N chunks into f32 VMEM ----
        for j in range(n_chunks):
            xc = x_ref[b, j * CN:(j + 1) * CN, :].astype(jnp.bfloat16)     # (CN, D)
            qk = jnp.dot(xc, w_qk, preferred_element_type=jnp.float32)     # (CN, 2D) f32
            q = (qk[:, :D] + b_q).astype(jnp.bfloat16)                     # (CN, D)
            k = (qk[:, D:] + b_k).astype(jnp.bfloat16)                     # (CN, D)
            # q^T @ k without materializing a transpose: contract axis 0.
            contrib = lax.dot_general(
                q, k, dimension_numbers=(((0,), (0,)), ((), ())),
                preferred_element_type=jnp.float32)                        # (D, D)
            if j == 0:
                logits_ref[...] = contrib
            else:
                logits_ref[...] += contrib

        # ---- Softmax over rows (== torch.softmax(..., dim=1) on (B, D, D)) ----
        logits = logits_ref[...]
        mx = jnp.max(logits, axis=0, keepdims=True)
        e = jnp.exp(logits - mx)
        s = e * pl.reciprocal(jnp.sum(e, axis=0, keepdims=True), approx=True)
        # Fold alpha into S once per batch (hoists the scalar splat out of the
        # chunk loop and removes a per-chunk VPU multiply).
        s_scaled = (alpha * s).astype(jnp.bfloat16)                        # (D, D)

        # ---- Pass 2: out_chunk = x_chunk + V_chunk @ (alpha * S) ----
        for j in range(n_chunks):
            xc = x_ref[b, j * CN:(j + 1) * CN, :]                          # (CN, D) f32
            v = jnp.dot(xc.astype(jnp.bfloat16), w_v,
                        preferred_element_type=jnp.float32) + b_v          # (CN, D) f32
            attn = jnp.dot(v.astype(jnp.bfloat16), s_scaled,
                           preferred_element_type=jnp.float32)             # (CN, D) f32
            o_ref[b, j * CN:(j + 1) * CN, :] = (xc + attn).astype(o_ref.dtype)


def _vmem_budget_and_cores():
    """Per-generation VMEM budget (bytes) and TensorCores per device.
    Conservative fallback matches v7x (64 MiB VMEM, 2 TCs)."""
    try:
        kind = jax.devices()[0].device_kind.lower()
    except Exception:
        return 48 * 1024 * 1024, 2
    if "v2" in kind or "v3" in kind:
        return 12 * 1024 * 1024, 1           # small-VMEM legacy parts
    if any(t in kind for t in ("v5 lite", "v5e", "v5lite", "v6 lite", "v6e", "v6lite")):
        return 96 * 1024 * 1024, 1           # 128 MiB physical, 1 TC
    if "v7" in kind:
        return 48 * 1024 * 1024, 2           # 64 MiB physical, 2 TCs
    return 48 * 1024 * 1024, 2               # unknown / megacore parts: conservative


def _pick_block_n(N, cap=512):
    """Largest divisor of N that is <= cap (chunk of rows fed to the MXU)."""
    bn = min(N, cap)
    while N % bn:
        bn -= 1
    return bn


def _pick_block_b(B, N, D, x_itemsize, block_n, vmem_budget, num_cores):
    """Largest batch tile whose per-step VMEM estimate fits the budget; on
    multi-TC chips keep the grid at least `num_cores` long so the 'parallel'
    batch axis gives every TensorCore work."""
    def est(tb):
        io_tile = tb * N * D * x_itemsize              # x tile == out tile
        w = 2 * (D * 3 * D * 2)                        # bf16 fused weights (2 bufs, worst case)
        bias = 2 * (3 * D * 4)
        logits = D * D * 4                             # f32 scratch accumulator
        live = block_n * 3 * D * 4 + 2 * D * D * 4     # per-chunk qk/v values + S
        return 2 * 2 * io_tile + w + bias + logits + live   # x & out double-buffered

    divisors = [d for d in range(1, B + 1) if B % d == 0]
    fits = [d for d in divisors if est(d) <= vmem_budget] or [1]
    if num_cores >= 2:
        multi = [d for d in fits if B // d >= num_cores]
        if multi:
            fits = multi
    return max(fits)


def dan_forward(x, wq, bq, wk, bk, wv, bv, alpha, *, block_b=None, block_n=None):
    """x: (B, N, D); wq/wk/wv: (D, D) laid out for x @ W (i.e. PyTorch W^T);
    b*: (D,); alpha: scalar."""
    B, N, D = x.shape

    # Fuse the three projections into one weight / bias (weights bf16 for MXU).
    wqkv = jnp.concatenate([wq, wk, wv], axis=1).astype(jnp.bfloat16)    # (D, 3D)
    bqkv = jnp.concatenate([bq, bk, bv]).reshape(1, 3 * D).astype(jnp.float32)
    alpha1 = jnp.asarray(alpha, jnp.float32).reshape(1)                  # SMEM scalar

    vmem_budget, num_cores = _vmem_budget_and_cores()
    if block_n is None:
        block_n = _pick_block_n(N)
    assert N % block_n == 0, (N, block_n)
    if block_b is None:
        block_b = _pick_block_b(B, N, D, x.dtype.itemsize, block_n, vmem_budget, num_cores)
    assert B % block_b == 0, (B, block_b)
    grid = (B // block_b,)

    # Advisory cost for XLA's scheduler around the custom call.
    flops = 10 * B * N * D * D                       # 6 (QKV proj) + 2 (Q^T K) + 2 (V S)
    bytes_accessed = (2 * B * N * D * x.dtype.itemsize
                      + wqkv.size * wqkv.dtype.itemsize + bqkv.size * 4 + 4)
    cost = pl.CostEstimate(flops=flops, transcendentals=B * D * D,
                           bytes_accessed=bytes_accessed)

    def build(single_buffer_weights):
        def const_spec(shape):
            # Grid-invariant blocks (constant index_map): single-buffer them so
            # a second copy of the fused weight doesn't sit in VMEM (matters at
            # d_model=768 on v7x's 64 MiB VMEM).
            if single_buffer_weights:
                return pl.BlockSpec(shape, lambda i, a: (0, 0),
                                    pipeline_mode=pl.Buffered(1))
            return pl.BlockSpec(shape, lambda i, a: (0, 0))

        # NOTE: with num_scalar_prefetch=1, every index_map receives the
        # prefetch (alpha) ref as a trailing positional arg.
        return pl.pallas_call(
            functools.partial(dan_kernel, block_n),
            out_shape=jax.ShapeDtypeStruct((B, N, D), x.dtype),
            grid_spec=pltpu.PrefetchScalarGridSpec(
                num_scalar_prefetch=1,                                      # alpha -> SMEM
                grid=grid,
                in_specs=[
                    pl.BlockSpec((block_b, N, D), lambda i, a: (i, 0, 0)),  # x tile
                    const_spec((D, 3 * D)),                                 # fused Wqkv (bf16)
                    const_spec((1, 3 * D)),                                 # fused bias (f32)
                ],
                out_specs=pl.BlockSpec((block_b, N, D), lambda i, a: (i, 0, 0)),
                scratch_shapes=[pltpu.VMEM((D, D), jnp.float32)],           # logits accumulator
            ),
            compiler_params=pltpu.CompilerParams(
                dimension_semantics=("parallel",),
                vmem_limit_bytes=vmem_budget,
            ),
            cost_estimate=cost,
        )

    try:
        return build(single_buffer_weights=True)(alpha1, x, wqkv, bqkv)
    except Exception:
        # Older/newer jax without BlockSpec pipeline_mode / pl.Buffered(1):
        # fall back to default double-buffering (correctness identical).
        return build(single_buffer_weights=False)(alpha1, x, wqkv, bqkv)


def dan_reference(x, wq, bq, wk, bk, wv, bv, alpha):
    xf = x.astype(jnp.float32)
    q = xf @ wq + bq
    k = xf @ wk + bk
    v = xf @ wv + bv
    logits = jnp.einsum('bnd,bne->bde', q, k)
    s = jax.nn.softmax(logits, axis=1)
    return (xf + alpha * jnp.einsum('bnd,bde->bne', v, s)).astype(x.dtype)


if __name__ == "__main__":
    key = jax.random.PRNGKey(0)

    def make_inputs(B, N, D, k):
        ks = jax.random.split(k, 7)
        x = jax.random.normal(ks[0], (B, N, D), dtype=jnp.float32)
        bound = 1.0 / np.sqrt(D)                       # nn.Linear-style init bounds
        wq = jax.random.uniform(ks[1], (D, D), jnp.float32, -bound, bound)
        wk = jax.random.uniform(ks[2], (D, D), jnp.float32, -bound, bound)
        wv = jax.random.uniform(ks[3], (D, D), jnp.float32, -bound, bound)
        bq = jax.random.uniform(ks[4], (D,), jnp.float32, -bound, bound)
        bk = jax.random.uniform(ks[5], (D,), jnp.float32, -bound, bound)
        bv = jax.random.uniform(ks[6], (D,), jnp.float32, -bound, bound)
        return x, wq, bq, wk, bk, wv, bv

    k1, k2 = jax.random.split(key)

    # --- Case 1: small stand-in for d_model=768, keeps (8, 128) alignment ---
    args1 = make_inputs(4, 16, 128, k1)

    # alpha = 0 (the Parameter(torch.zeros(1)) init): output == input exactly.
    alpha0 = jnp.zeros((), jnp.float32)
    out0 = jax.block_until_ready(dan_forward(*args1, alpha0))
    ref0 = dan_reference(*args1, alpha0)
    np.testing.assert_allclose(np.asarray(out0), np.asarray(ref0), atol=1e-5, rtol=1e-5)

    # alpha != 0 exercises the full attention path.  bf16 MXU operands + EUP
    # approximate reciprocal -> relaxed tolerance vs. the pure-f32 reference.
    alpha_nz = jnp.asarray(0.5, jnp.float32)
    out1 = jax.block_until_ready(dan_forward(*args1, alpha_nz))
    ref1 = dan_reference(*args1, alpha_nz)
    np.testing.assert_allclose(np.asarray(out1), np.asarray(ref1), atol=2e-2, rtol=2e-2)

    # --- Case 2: larger N, block_n=128 forces the 2-chunk two-pass path ---
    args2 = make_inputs(2, 256, 128, k2)
    out2 = jax.block_until_ready(dan_forward(*args2, alpha_nz, block_n=128))
    ref2 = dan_reference(*args2, alpha_nz)
    np.testing.assert_allclose(np.asarray(out2), np.asarray(ref2), atol=5e-2, rtol=5e-2)

    print("KERNEL_OK")
</pallas_src>

<mosaic_0001>
module attributes {stable_mosaic.version = 11 : i64} {
  func.func @dan_kernel(%arg0: i32, %arg1: memref<1xf32, #tpu.memory_space<smem>>, %arg2: memref<2x16x128xf32, #tpu.memory_space<vmem>>, %arg3: memref<128x384xbf16, #tpu.memory_space<vmem>>, %arg4: memref<1x384xf32, #tpu.memory_space<vmem>>, %arg5: memref<2x16x128xf32, #tpu.memory_space<vmem>>, %arg6: memref<128x128xf32, #tpu.memory_space<vmem>>) attributes {dimension_semantics = [#tpu.dimension_semantics<parallel>], iteration_bounds = array<i64: 2>, scalar_prefetch = 1 : i64, scratch_operands = 1 : i64, tpu.core_type = #tpu.core_type<tc>, window_params = [{transform_indices = @transform_0, window_bounds = array<i64: 2, 16, 128>}, {pipeline_mode = #tpu.pipeline_mode<synchronous>, transform_indices = @transform_1, window_bounds = array<i64: 128, 384>}, {pipeline_mode = #tpu.pipeline_mode<synchronous>, transform_indices = @transform_2, window_bounds = array<i64: 1, 384>}, {transform_indices = @transform_3, window_bounds = array<i64: 2, 16, 128>}]} {
    %c0 = arith.constant 0 : index
    %0 = memref.load %arg1[%c0] : memref<1xf32, #tpu.memory_space<smem>>
    %c0_0 = arith.constant 0 : index
    %c0_1 = arith.constant 0 : index
    %1 = vector.load %arg3[%c0_0, %c0_1] : memref<128x384xbf16, #tpu.memory_space<vmem>>, vector<128x256xbf16>
    %c0_2 = arith.constant 0 : index
    %c256 = arith.constant 256 : index
    %2 = vector.load %arg3[%c0_2, %c256] : memref<128x384xbf16, #tpu.memory_space<vmem>>, vector<128x128xbf16>
    %c0_3 = arith.constant 0 : index
    %c0_4 = arith.constant 0 : index
    %3 = vector.load %arg4[%c0_3, %c0_4] : memref<1x384xf32, #tpu.memory_space<vmem>>, vector<1x128xf32>
    %c0_5 = arith.constant 0 : index
    %c128 = arith.constant 128 : index
    %4 = vector.load %arg4[%c0_5, %c128] : memref<1x384xf32, #tpu.memory_space<vmem>>, vector<1x128xf32>
    %c0_6 = arith.constant 0 : index
    %c256_7 = arith.constant 256 : index
    %5 = vector.load %arg4[%c0_6, %c256_7] : memref<1x384xf32, #tpu.memory_space<vmem>>, vector<1x128xf32>
    %c0_8 = arith.constant 0 : index
    %c0_9 = arith.constant 0 : index
    %c0_10 = arith.constant 0 : index
    %6 = vector.load %arg2[%c0_8, %c0_9, %c0_10] : memref<2x16x128xf32, #tpu.memory_space<vmem>>, vector<1x16x128xf32>
    %7 = vector.shape_cast %6 : vector<1x16x128xf32> to vector<16x128xf32>
    %8 = arith.truncf %7 : vector<16x128xf32> to vector<16x128xbf16>
    %cst = arith.constant dense<0.000000e+00> : vector<16x256xf32>
    %9 = tpu.matmul %8, %1, %cst {dimension_numbers = #tpu.dot_dimension_numbers<[1], [0], [0], [1], [0, 0, 1, 1], [], []>} : vector<16x128xbf16>, vector<128x256xbf16>, vector<16x256xf32> -> vector<16x256xf32>
    %10 = vector.extract_strided_slice %9 {offsets = [0, 0], sizes = [16, 128], strides = [1, 1]} : vector<16x256xf32> to vector<16x128xf32>
    %11 = vector.broadcast %3 : vector<1x128xf32> to vector<16x128xf32>
    %12 = arith.addf %10, %11 : vector<16x128xf32>
    %13 = arith.truncf %12 : vector<16x128xf32> to vector<16x128xbf16>
    %14 = vector.extract_strided_slice %9 {offsets = [0, 128], sizes = [16, 128], strides = [1, 1]} : vector<16x256xf32> to vector<16x128xf32>
    %15 = vector.broadcast %4 : vector<1x128xf32> to vector<16x128xf32>
    %16 = arith.addf %14, %15 : vector<16x128xf32>
    %17 = arith.truncf %16 : vector<16x128xf32> to vector<16x128xbf16>
    %cst_11 = arith.constant dense<0.000000e+00> : vector<128x128xf32>
    %18 = tpu.matmul %13, %17, %cst_11 {dimension_numbers = #tpu.dot_dimension_numbers<[0], [0], [1], [1], [0, 1, 1, 1], [], []>} : vector<16x128xbf16>, vector<16x128xbf16>, vector<128x128xf32> -> vector<128x128xf32>
    %c0_12 = arith.constant 0 : index
    %c0_13 = arith.constant 0 : index
    %19 = vector.load %arg6[%c0_12, %c0_13] : memref<128x128xf32, #tpu.memory_space<vmem>>, vector<128x128xf32>
    tpu.vector_store %arg6[%c0_12, %c0_13], %18 {strides = array<i32>} : memref<128x128xf32, #tpu.memory_space<vmem>>, vector<128x128xf32>,
    %c0_14 = arith.constant 0 : index
    %c0_15 = arith.constant 0 : index
    %20 = vector.load %arg6[%c0_14, %c0_15] : memref<128x128xf32, #tpu.memory_space<vmem>>, vector<128x128xf32>
    %cst_16 = arith.constant dense<0xFF800000> : vector<128xf32>
    %21 = vector.multi_reduction <maximumf>, %20, %cst_16 [0] : vector<128x128xf32> to vector<128xf32>
    %22 = vector.shape_cast %21 : vector<128xf32> to vector<1x128xf32>
    %23 = vector.broadcast %22 : vector<1x128xf32> to vector<128x128xf32>
    %24 = arith.subf %20, %23 : vector<128x128xf32>
    %25 = math.exp %24 : vector<128x128xf32>
    %cst_17 = arith.constant dense<0.000000e+00> : vector<128xf32>
    %26 = vector.multi_reduction <add>, %25, %cst_17 [0] : vector<128x128xf32> to vector<128xf32>
    %27 = vector.shape_cast %26 : vector<128xf32> to vector<1x128xf32>
    %28 = tpu.reciprocal %27 {approx = true} : vector<1x128xf32> -> vector<1x128xf32>
    %29 = vector.broadcast %28 : vector<1x128xf32> to vector<128x128xf32>
    %30 = arith.mulf %25, %29 : vector<128x128xf32>
    %31 = vector.broadcast %0 : f32 to vector<128x128xf32>
    %32 = arith.mulf %31, %30 : vector<128x128xf32>
    %33 = arith.truncf %32 : vector<128x128xf32> to vector<128x128xbf16>
    %c0_18 = arith.constant 0 : index
    %c0_19 = arith.constant 0 : index
    %c0_20 = arith.constant 0 : index
    %34 = vector.load %arg2[%c0_18, %c0_19, %c0_20] : memref<2x16x128xf32, #tpu.memory_space<vmem>>, vector<1x16x128xf32>
    %35 = vector.shape_cast %34 : vector<1x16x128xf32> to vector<16x128xf32>
    %36 = arith.truncf %35 : vector<16x128xf32> to vector<16x128xbf16>
    %cst_21 = arith.constant dense<0.000000e+00> : vector<16x128xf32>
    %37 = tpu.matmul %36, %2, %cst_21 {dimension_numbers = #tpu.dot_dimension_numbers<[1], [0], [0], [1], [0, 0, 1, 1], [], []>} : vector<16x128xbf16>, vector<128x128xbf16>, vector<16x128xf32> -> vector<16x128xf32>
    %38 = vector.broadcast %5 : vector<1x128xf32> to vector<16x128xf32>
    %39 = arith.addf %37, %38 : vector<16x128xf32>
    %40 = arith.truncf %39 : vector<16x128xf32> to vector<16x128xbf16>
    %cst_22 = arith.constant dense<0.000000e+00> : vector<16x128xf32>
    %41 = tpu.matmul %40, %33, %cst_22 {dimension_numbers = #tpu.dot_dimension_numbers<[1], [0], [0], [1], [0, 0, 1, 1], [], []>} : vector<16x128xbf16>, vector<128x128xbf16>, vector<16x128xf32> -> vector<16x128xf32>
    %42 = arith.addf %35, %41 : vector<16x128xf32>
    %c0_23 = arith.constant 0 : index
    %c0_24 = arith.constant 0 : index
    %c0_25 = arith.constant 0 : index
    %43 = vector.load %arg5[%c0_23, %c0_24, %c0_25] : memref<2x16x128xf32, #tpu.memory_space<vmem>>, vector<1x16x128xf32>
    %44 = vector.shape_cast %43 : vector<1x16x128xf32> to vector<16x128xf32>
    %45 = vector.shape_cast %42 : vector<16x128xf32> to vector<1x16x128xf32>
    tpu.vector_store %arg5[%c0_23, %c0_24, %c0_25], %45 {strides = array<i32>} : memref<2x16x128xf32, #tpu.memory_space<vmem>>, vector<1x16x128xf32>,
    %c1 = arith.constant 1 : index
    %c0_26 = arith.constant 0 : index
    %c0_27 = arith.constant 0 : index
    %46 = vector.load %arg2[%c1, %c0_26, %c0_27] : memref<2x16x128xf32, #tpu.memory_space<vmem>>, vector<1x16x128xf32>
    %47 = vector.shape_cast %46 : vector<1x16x128xf32> to vector<16x128xf32>
    %48 = arith.truncf %47 : vector<16x128xf32> to vector<16x128xbf16>
    %cst_28 = arith.constant dense<0.000000e+00> : vector<16x256xf32>
    %49 = tpu.matmul %48, %1, %cst_28 {dimension_numbers = #tpu.dot_dimension_numbers<[1], [0], [0], [1], [0, 0, 1, 1], [], []>} : vector<16x128xbf16>, vector<128x256xbf16>, vector<16x256xf32> -> vector<16x256xf32>
    %50 = vector.extract_strided_slice %49 {offsets = [0, 0], sizes = [16, 128], strides = [1, 1]} : vector<16x256xf32> to vector<16x128xf32>
    %51 = vector.broadcast %3 : vector<1x128xf32> to vector<16x128xf32>
    %52 = arith.addf %50, %51 : vector<16x128xf32>
    %53 = arith.truncf %52 : vector<16x128xf32> to vector<16x128xbf16>
    %54 = vector.extract_strided_slice %49 {offsets = [0, 128], sizes = [16, 128], strides = [1, 1]} : vector<16x256xf32> to vector<16x128xf32>
    %55 = vector.broadcast %4 : vector<1x128xf32> to vector<16x128xf32>
    %56 = arith.addf %54, %55 : vector<16x128xf32>
    %57 = arith.truncf %56 : vector<16x128xf32> to vector<16x128xbf16>
    %cst_29 = arith.constant dense<0.000000e+00> : vector<128x128xf32>
    %58 = tpu.matmul %53, %57, %cst_29 {dimension_numbers = #tpu.dot_dimension_numbers<[0], [0], [1], [1], [0, 1, 1, 1], [], []>} : vector<16x128xbf16>, vector<16x128xbf16>, vector<128x128xf32> -> vector<128x128xf32>
    %c0_30 = arith.constant 0 : index
    %c0_31 = arith.constant 0 : index
    %59 = vector.load %arg6[%c0_30, %c0_31] : memref<128x128xf32, #tpu.memory_space<vmem>>, vector<128x128xf32>
    tpu.vector_store %arg6[%c0_30, %c0_31], %58 {strides = array<i32>} : memref<128x128xf32, #tpu.memory_space<vmem>>, vector<128x128xf32>,
    %c0_32 = arith.constant 0 : index
    %c0_33 = arith.constant 0 : index
    %60 = vector.load %arg6[%c0_32, %c0_33] : memref<128x128xf32, #tpu.memory_space<vmem>>, vector<128x128xf32>
    %cst_34 = arith.constant dense<0xFF800000> : vector<128xf32>
    %61 = vector.multi_reduction <maximumf>, %60, %cst_34 [0] : vector<128x128xf32> to vector<128xf32>
    %62 = vector.shape_cast %61 : vector<128xf32> to vector<1x128xf32>
    %63 = vector.broadcast %62 : vector<1x128xf32> to vector<128x128xf32>
    %64 = arith.subf %60, %63 : vector<128x128xf32>
    %65 = math.exp %64 : vector<128x128xf32>
    %cst_35 = arith.constant dense<0.000000e+00> : vector<128xf32>
    %66 = vector.multi_reduction <add>, %65, %cst_35 [0] : vector<128x128xf32> to vector<128xf32>
    %67 = vector.shape_cast %66 : vector<128xf32> to vector<1x128xf32>
    %68 = tpu.reciprocal %67 {approx = true} : vector<1x128xf32> -> vector<1x128xf32>
    %69 = vector.broadcast %68 : vector<1x128xf32> to vector<128x128xf32>
    %70 = arith.mulf %65, %69 : vector<128x128xf32>
    %71 = vector.broadcast %0 : f32 to vector<128x128xf32>
    %72 = arith.mulf %71, %70 : vector<128x128xf32>
    %73 = arith.truncf %72 : vector<128x128xf32> to vector<128x128xbf16>
    %c1_36 = arith.constant 1 : index
    %c0_37 = arith.constant 0 : index
    %c0_38 = arith.constant 0 : index
    %74 = vector.load %arg2[%c1_36, %c0_37, %c0_38] : memref<2x16x128xf32, #tpu.memory_space<vmem>>, vector<1x16x128xf32>
    %75 = vector.shape_cast %74 : vector<1x16x128xf32> to vector<16x128xf32>
    %76 = arith.truncf %75 : vector<16x128xf32> to vector<16x128xbf16>
    %cst_39 = arith.constant dense<0.000000e+00> : vector<16x128xf32>
    %77 = tpu.matmul %76, %2, %cst_39 {dimension_numbers = #tpu.dot_dimension_numbers<[1], [0], [0], [1], [0, 0, 1, 1], [], []>} : vector<16x128xbf16>, vector<128x128xbf16>, vector<16x128xf32> -> vector<16x128xf32>
    %78 = vector.broadcast %5 : vector<1x128xf32> to vector<16x128xf32>
    %79 = arith.addf %77, %78 : vector<16x128xf32>
    %80 = arith.truncf %79 : vector<16x128xf32> to vector<16x128xbf16>
    %cst_40 = arith.constant dense<0.000000e+00> : vector<16x128xf32>
    %81 = tpu.matmul %80, %73, %cst_40 {dimension_numbers = #tpu.dot_dimension_numbers<[1], [0], [0], [1], [0, 0, 1, 1], [], []>} : vector<16x128xbf16>, vector<128x128xbf16>, vector<16x128xf32> -> vector<16x128xf32>
    %82 = arith.addf %75, %81 : vector<16x128xf32>
    %c1_41 = arith.constant 1 : index
    %c0_42 = arith.constant 0 : index
    %c0_43 = arith.constant 0 : index
    %83 = vector.load %arg5[%c1_41, %c0_42, %c0_43] : memref<2x16x128xf32, #tpu.memory_space<vmem>>, vector<1x16x128xf32>
    %84 = vector.shape_cast %83 : vector<1x16x128xf32> to vector<16x128xf32>
    %85 = vector.shape_cast %82 : vector<16x128xf32> to vector<1x16x128xf32>
    tpu.vector_store %arg5[%c1_41, %c0_42, %c0_43], %85 {strides = array<i32>} : memref<2x16x128xf32, #tpu.memory_space<vmem>>, vector<1x16x128xf32>,
    return
  }
  func.func @transform_0(%arg0: i32, %arg1: memref<1xf32, #tpu.memory_space<smem>>) -> (i32, i32, i32) {
    %c0_i32 = arith.constant 0 : i32
    %c0_i32_0 = arith.constant 0 : i32
    %c0_i32_1 = arith.constant 0 : i32
    return %arg0, %c0_i32, %c0_i32_0 : i32, i32, i32
  }
  func.func @transform_1(%arg0: i32, %arg1: memref<1xf32, #tpu.memory_space<smem>>) -> (i32, i32) {
    %c0_i32 = arith.constant 0 : i32
    %c0_i32_0 = arith.constant 0 : i32
    %c0_i32_1 = arith.constant 0 : i32
    return %c0_i32, %c0_i32_0 : i32, i32
  }
  func.func @transform_2(%arg0: i32, %arg1: memref<1xf32, #tpu.memory_space<smem>>) -> (i32, i32) {
    %c0_i32 = arith.constant 0 : i32
    %c0_i32_0 = arith.constant 0 : i32
    %c0_i32_1 = arith.constant 0 : i32
    return %c0_i32, %c0_i32_0 : i32, i32
  }
  func.func @transform_3(%arg0: i32, %arg1: memref<1xf32, #tpu.memory_space<smem>>) -> (i32, i32, i32) {
    %c0_i32 = arith.constant 0 : i32
    %c0_i32_0 = arith.constant 0 : i32
    %c0_i32_1 = arith.constant 0 : i32
    return %arg0, %c0_i32, %c0_i32_0 : i32, i32, i32
  }
}

module attributes {stable_mosaic.version = 11 : i64} {
  func.func @dan_kernel(%arg0: i32, %arg1: memref<1xf32, #tpu.memory_space<smem>>, %arg2: memref<2x16x128xf32, #tpu.memory_space<vmem>>, %arg3: memref<128x384xbf16, #tpu.memory_space<vmem>>, %arg4: memref<1x384xf32, #tpu.memory_space<vmem>>, %arg5: memref<2x16x128xf32, #tpu.memory_space<vmem>>, %arg6: memref<128x128xf32, #tpu.memory_space<vmem>>) attributes {dimension_semantics = [#tpu.dimension_semantics<parallel>], iteration_bounds = array<i64: 2>, scalar_prefetch = 1 : i64, scratch_operands = 1 : i64, tpu.core_type = #tpu.core_type<tc>, window_params = [{transform_indices = @transform_0, window_bounds = array<i64: 2, 16, 128>}, {pipeline_mode = #tpu.pipeline_mode<synchronous>, transform_indices = @transform_1, window_bounds = array<i64: 128, 384>}, {pipeline_mode = #tpu.pipeline_mode<synchronous>, transform_indices = @transform_2, window_bounds = array<i64: 1, 384>}, {transform_indices = @transform_3, window_bounds = array<i64: 2, 16, 128>}]} {
    %c0 = arith.constant 0 : index
    %0 = memref.load %arg1[%c0] : memref<1xf32, #tpu.memory_space<smem>>
    %c0_0 = arith.constant 0 : index
    %c0_1 = arith.constant 0 : index
    %1 = vector.load %arg3[%c0_0, %c0_1] : memref<128x384xbf16, #tpu.memory_space<vmem>>, vector<128x256xbf16>
    %c0_2 = arith.constant 0 : index
    %c256 = arith.constant 256 : index
    %2 = vector.load %arg3[%c0_2, %c256] : memref<128x384xbf16, #tpu.memory_space<vmem>>, vector<128x128xbf16>
    %c0_3 = arith.constant 0 : index
    %c0_4 = arith.constant 0 : index
    %3 = vector.load %arg4[%c0_3, %c0_4] : memref<1x384xf32, #tpu.memory_space<vmem>>, vector<1x128xf32>
    %c0_5 = arith.constant 0 : index
    %c128 = arith.constant 128 : index
    %4 = vector.load %arg4[%c0_5, %c128] : memref<1x384xf32, #tpu.memory_space<vmem>>, vector<1x128xf32>
    %c0_6 = arith.constant 0 : index
    %c256_7 = arith.constant 256 : index
    %5 = vector.load %arg4[%c0_6, %c256_7] : memref<1x384xf32, #tpu.memory_space<vmem>>, vector<1x128xf32>
    %c0_8 = arith.constant 0 : index
    %c0_9 = arith.constant 0 : index
    %c0_10 = arith.constant 0 : index
    %6 = vector.load %arg2[%c0_8, %c0_9, %c0_10] : memref<2x16x128xf32, #tpu.memory_space<vmem>>, vector<1x16x128xf32>
    %7 = vector.shape_cast %6 : vector<1x16x128xf32> to vector<16x128xf32>
    %8 = arith.truncf %7 : vector<16x128xf32> to vector<16x128xbf16>
    %cst = arith.constant dense<0.000000e+00> : vector<16x256xf32>
    %9 = tpu.matmul %8, %1, %cst {dimension_numbers = #tpu.dot_dimension_numbers<[1], [0], [0], [1], [0, 0, 1, 1], [], []>} : vector<16x128xbf16>, vector<128x256xbf16>, vector<16x256xf32> -> vector<16x256xf32>
    %10 = vector.extract_strided_slice %9 {offsets = [0, 0], sizes = [16, 128], strides = [1, 1]} : vector<16x256xf32> to vector<16x128xf32>
    %11 = vector.broadcast %3 : vector<1x128xf32> to vector<16x128xf32>
    %12 = arith.addf %10, %11 : vector<16x128xf32>
    %13 = arith.truncf %12 : vector<16x128xf32> to vector<16x128xbf16>
    %14 = vector.extract_strided_slice %9 {offsets = [0, 128], sizes = [16, 128], strides = [1, 1]} : vector<16x256xf32> to vector<16x128xf32>
    %15 = vector.broadcast %4 : vector<1x128xf32> to vector<16x128xf32>
    %16 = arith.addf %14, %15 : vector<16x128xf32>
    %17 = arith.truncf %16 : vector<16x128xf32> to vector<16x128xbf16>
    %cst_11 = arith.constant dense<0.000000e+00> : vector<128x128xf32>
    %18 = tpu.matmul %13, %17, %cst_11 {dimension_numbers = #tpu.dot_dimension_numbers<[0], [0], [1], [1], [0, 1, 1, 1], [], []>} : vector<16x128xbf16>, vector<16x128xbf16>, vector<128x128xf32> -> vector<128x128xf32>
    %c0_12 = arith.constant 0 : index
    %c0_13 = arith.constant 0 : index
    %19 = vector.load %arg6[%c0_12, %c0_13] : memref<128x128xf32, #tpu.memory_space<vmem>>, vector<128x128xf32>
    tpu.vector_store %arg6[%c0_12, %c0_13], %18 {strides = array<i32>} : memref<128x128xf32, #tpu.memory_space<vmem>>, vector<128x128xf32>,
    %c0_14 = arith.constant 0 : index
    %c0_15 = arith.constant 0 : index
    %20 = vector.load %arg6[%c0_14, %c0_15] : memref<128x128xf32, #tpu.memory_space<vmem>>, vector<128x128xf32>
    %cst_16 = arith.constant dense<0xFF800000> : vector<128xf32>
    %21 = vector.multi_reduction <maximumf>, %20, %cst_16 [0] : vector<128x128xf32> to vector<128xf32>
    %22 = vector.shape_cast %21 : vector<128xf32> to vector<1x128xf32>
    %23 = vector.broadcast %22 : vector<1x128xf32> to vector<128x128xf32>
    %24 = arith.subf %20, %23 : vector<128x128xf32>
    %25 = math.exp %24 : vector<128x128xf32>
    %cst_17 = arith.constant dense<0.000000e+00> : vector<128xf32>
    %26 = vector.multi_reduction <add>, %25, %cst_17 [0] : vector<128x128xf32> to vector<128xf32>
    %27 = vector.shape_cast %26 : vector<128xf32> to vector<1x128xf32>
    %28 = tpu.reciprocal %27 {approx = true} : vector<1x128xf32> -> vector<1x128xf32>
    %29 = vector.broadcast %28 : vector<1x128xf32> to vector<128x128xf32>
    %30 = arith.mulf %25, %29 : vector<128x128xf32>
    %31 = vector.broadcast %0 : f32 to vector<128x128xf32>
    %32 = arith.mulf %31, %30 : vector<128x128xf32>
    %33 = arith.truncf %32 : vector<128x128xf32> to vector<128x128xbf16>
    %c0_18 = arith.constant 0 : index
    %c0_19 = arith.constant 0 : index
    %c0_20 = arith.constant 0 : index
    %34 = vector.load %arg2[%c0_18, %c0_19, %c0_20] : memref<2x16x128xf32, #tpu.memory_space<vmem>>, vector<1x16x128xf32>
    %35 = vector.shape_cast %34 : vector<1x16x128xf32> to vector<16x128xf32>
    %36 = arith.truncf %35 : vector<16x128xf32> to vector<16x128xbf16>
    %cst_21 = arith.constant dense<0.000000e+00> : vector<16x128xf32>
    %37 = tpu.matmul %36, %2, %cst_21 {dimension_numbers = #tpu.dot_dimension_numbers<[1], [0], [0], [1], [0, 0, 1, 1], [], []>} : vector<16x128xbf16>, vector<128x128xbf16>, vector<16x128xf32> -> vector<16x128xf32>
    %38 = vector.broadcast %5 : vector<1x128xf32> to vector<16x128xf32>
    %39 = arith.addf %37, %38 : vector<16x128xf32>
    %40 = arith.truncf %39 : vector<16x128xf32> to vector<16x128xbf16>
    %cst_22 = arith.constant dense<0.000000e+00> : vector<16x128xf32>
    %41 = tpu.matmul %40, %33, %cst_22 {dimension_numbers = #tpu.dot_dimension_numbers<[1], [0], [0], [1], [0, 0, 1, 1], [], []>} : vector<16x128xbf16>, vector<128x128xbf16>, vector<16x128xf32> -> vector<16x128xf32>
    %42 = arith.addf %35, %41 : vector<16x128xf32>
    %c0_23 = arith.constant 0 : index
    %c0_24 = arith.constant 0 : index
    %c0_25 = arith.constant 0 : index
    %43 = vector.load %arg5[%c0_23, %c0_24, %c0_25] : memref<2x16x128xf32, #tpu.memory_space<vmem>>, vector<1x16x128xf32>
    %44 = vector.shape_cast %43 : vector<1x16x128xf32> to vector<16x128xf32>
    %45 = vector.shape_cast %42 : vector<16x128xf32> to vector<1x16x128xf32>
    tpu.vector_store %arg5[%c0_23, %c0_24, %c0_25], %45 {strides = array<i32>} : memref<2x16x128xf32, #tpu.memory_space<vmem>>, vector<1x16x128xf32>,
    %c1 = arith.constant 1 : index
    %c0_26 = arith.constant 0 : index
    %c0_27 = arith.constant 0 : index
    %46 = vector.load %arg2[%c1, %c0_26, %c0_27] : memref<2x16x128xf32, #tpu.memory_space<vmem>>, vector<1x16x128xf32>
    %47 = vector.shape_cast %46 : vector<1x16x128xf32> to vector<16x128xf32>
    %48 = arith.truncf %47 : vector<16x128xf32> to vector<16x128xbf16>
    %cst_28 = arith.constant dense<0.000000e+00> : vector<16x256xf32>
    %49 = tpu.matmul %48, %1, %cst_28 {dimension_numbers = #tpu.dot_dimension_numbers<[1], [0], [0], [1], [0, 0, 1, 1], [], []>} : vector<16x128xbf16>, vector<128x256xbf16>, vector<16x256xf32> -> vector<16x256xf32>
    %50 = vector.extract_strided_slice %49 {offsets = [0, 0], sizes = [16, 128], strides = [1, 1]} : vector<16x256xf32> to vector<16x128xf32>
    %51 = vector.broadcast %3 : vector<1x128xf32> to vector<16x128xf32>
    %52 = arith.addf %50, %51 : vector<16x128xf32>
    %53 = arith.truncf %52 : vector<16x128xf32> to vector<16x128xbf16>
    %54 = vector.extract_strided_slice %49 {offsets = [0, 128], sizes = [16, 128], strides = [1, 1]} : vector<16x256xf32> to vector<16x128xf32>
    %55 = vector.broadcast %4 : vector<1x128xf32> to vector<16x128xf32>
    %56 = arith.addf %54, %55 : vector<16x128xf32>
    %57 = arith.truncf %56 : vector<16x128xf32> to vector<16x128xbf16>
    %cst_29 = arith.constant dense<0.000000e+00> : vector<128x128xf32>
    %58 = tpu.matmul %53, %57, %cst_29 {dimension_numbers = #tpu.dot_dimension_numbers<[0], [0], [1], [1], [0, 1, 1, 1], [], []>} : vector<16x128xbf16>, vector<16x128xbf16>, vector<128x128xf32> -> vector<128x128xf32>
    %c0_30 = arith.constant 0 : index
    %c0_31 = arith.constant 0 : index
    %59 = vector.load %arg6[%c0_30, %c0_31] : memref<128x128xf32, #tpu.memory_space<vmem>>, vector<128x128xf32>
    tpu.vector_store %arg6[%c0_30, %c0_31], %58 {strides = array<i32>} : memref<128x128xf32, #tpu.memory_space<vmem>>, vector<128x128xf32>,
    %c0_32 = arith.constant 0 : index
    %c0_33 = arith.constant 0 : index
    %60 = vector.load %arg6[%c0_32, %c0_33] : memref<128x128xf32, #tpu.memory_space<vmem>>, vector<128x128xf32>
    %cst_34 = arith.constant dense<0xFF800000> : vector<128xf32>
    %61 = vector.multi_reduction <maximumf>, %60, %cst_34 [0] : vector<128x128xf32> to vector<128xf32>
    %62 = vector.shape_cast %61 : vector<128xf32> to vector<1x128xf32>
    %63 = vector.broadcast %62 : vector<1x128xf32> to vector<128x128xf32>
    %64 = arith.subf %60, %63 : vector<128x128xf32>
    %65 = math.exp %64 : vector<128x128xf32>
    %cst_35 = arith.constant dense<0.000000e+00> : vector<128xf32>
    %66 = vector.multi_reduction <add>, %65, %cst_35 [0] : vector<128x128xf32> to vector<128xf32>
    %67 = vector.shape_cast %66 : vector<128xf32> to vector<1x128xf32>
    %68 = tpu.reciprocal %67 {approx = true} : vector<1x128xf32> -> vector<1x128xf32>
    %69 = vector.broadcast %68 : vector<1x128xf32> to vector<128x128xf32>
    %70 = arith.mulf %65, %69 : vector<128x128xf32>
    %71 = vector.broadcast %0 : f32 to vector<128x128xf32>
    %72 = arith.mulf %71, %70 : vector<128x128xf32>
    %73 = arith.truncf %72 : vector<128x128xf32> to vector<128x128xbf16>
    %c1_36 = arith.constant 1 : index
    %c0_37 = arith.constant 0 : index
    %c0_38 = arith.constant 0 : index
    %74 = vector.load %arg2[%c1_36, %c0_37, %c0_38] : memref<2x16x128xf32, #tpu.memory_space<vmem>>, vector<1x16x128xf32>
    %75 = vector.shape_cast %74 : vector<1x16x128xf32> to vector<16x128xf32>
    %76 = arith.truncf %75 : vector<16x128xf32> to vector<16x128xbf16>
    %cst_39 = arith.constant dense<0.000000e+00> : vector<16x128xf32>
    %77 = tpu.matmul %76, %2, %cst_39 {dimension_numbers = #tpu.dot_dimension_numbers<[1], [0], [0], [1], [0, 0, 1, 1], [], []>} : vector<16x128xbf16>, vector<128x128xbf16>, vector<16x128xf32> -> vector<16x128xf32>
    %78 = vector.broadcast %5 : vector<1x128xf32> to vector<16x128xf32>
    %79 = arith.addf %77, %78 : vector<16x128xf32>
    %80 = arith.truncf %79 : vector<16x128xf32> to vector<16x128xbf16>
    %cst_40 = arith.constant dense<0.000000e+00> : vector<16x128xf32>
    %81 = tpu.matmul %80, %73, %cst_40 {dimension_numbers = #tpu.dot_dimension_numbers<[1], [0], [0], [1], [0, 0, 1, 1], [], []>} : vector<16x128xbf16>, vector<128x128xbf16>, vector<16x128xf32> -> vector<16x128xf32>
    %82 = arith.addf %75, %81 : vector<16x128xf32>
    %c1_41 = arith.constant 1 : index
    %c0_42 = arith.constant 0 : index
    %c0_43 = arith.constant 0 : index
    %83 = vector.load %arg5[%c1_41, %c0_42, %c0_43] : memref<2x16x128xf32, #tpu.memory_space<vmem>>, vector<1x16x128xf32>
    %84 = vector.shape_cast %83 : vector<1x16x128xf32> to vector<16x128xf32>
    %85 = vector.shape_cast %82 : vector<16x128xf32> to vector<1x16x128xf32>
    tpu.vector_store %arg5[%c1_41, %c0_42, %c0_43], %85 {strides = array<i32>} : memref<2x16x128xf32, #tpu.memory_space<vmem>>, vector<1x16x128xf32>,
    return
  }
  func.func @transform_0(%arg0: i32, %arg1: memref<1xf32, #tpu.memory_space<smem>>) -> (i32, i32, i32) {
    %c0_i32 = arith.constant 0 : i32
    %c0_i32_0 = arith.constant 0 : i32
    %c0_i32_1 = arith.constant 0 : i32
    return %arg0, %c0_i32, %c0_i32_0 : i32, i32, i32
  }
  func.func @transform_1(%arg0: i32, %arg1: memref<1xf32, #tpu.memory_space<smem>>) -> (i32, i32) {
    %c0_i32 = arith.constant 0 : i32
    %c0_i32_0 = arith.constant 0 : i32
    %c0_i32_1 = arith.constant 0 : i32
    return %c0_i32, %c0_i32_0 : i32, i32
  }
  func.func @transform_2(%arg0: i32, %arg1: memref<1xf32, #tpu.memory_space<smem>>) -> (i32, i32) {
    %c0_i32 = arith.constant 0 : i32
    %c0_i32_0 = arith.constant 0 : i32
    %c0_i32_1 = arith.constant 0 : i32
    return %c0_i32, %c0_i32_0 : i32, i32
  }
  func.func @transform_3(%arg0: i32, %arg1: memref<1xf32, #tpu.memory_space<smem>>) -> (i32, i32, i32) {
    %c0_i32 = arith.constant 0 : i32
    %c0_i32_0 = arith.constant 0 : i32
    %c0_i32_1 = arith.constant 0 : i32
    return %arg0, %c0_i32, %c0_i32_0 : i32, i32, i32
  }
}

</mosaic_0001>

<llo_original>
// kernel: tpu_custom_call.1
$region0: #{tpu_custom_call.1}
  #allocation0 [shape = 'u32[]', space=smem, size = 0x4, offset = 0x4, fixed_abs, tag = 'smem constant byte address 0x4 - core index']
  #allocation1 [shape = 'u32[144,128]{1,0:T(1,128)}', space=vmem, size = 0x12000, scoped, tag = 'internal scratch']
  #allocation2 [shape = 'f32[128,128]{1,0:T(8,128)}', space=vmem, size = 0x10000, scoped, tag = 'scratch operand']
  #allocation3 [shape = 's32[1]{0}', space=sflag, size = 0x4, scoped, tag = 'scoped memory for tpu_custom_call.1']
  #allocation4 [shape = 'f32[1]{0:T(128)S(6)}', space=smem, size = 0x200, scoped, tag = 'prefetched SMEM operand 0']
  %s0 = inlined_call_operand.<no memory space> [shape: f32[1], index: 0, kind: input, shape index: {}]
  %s1 = inlined_call_operand.hbm [shape: f32[4,16,128], index: 1, kind: input, shape index: {}]
  %s2 = inlined_call_operand.hbm [shape: bf16[128,384], index: 2, kind: input, shape index: {}]
  %s3 = inlined_call_operand.vmem [shape: f32[1,384], index: 3, kind: input, shape index: {}]
  %s4 = inlined_call_operand.hbm [shape: f32[4,16,128], index: 4, kind: output, shape index: {}]
  %s5 = sld [smem:[#allocation0]]
  $region53: #{tpu_custom_call.1} parent=0
    _
  %s7 = ssub.s32 1, %s5
  %s8 = scalar_select 0, %s7, %s5
  %9 = sst [smem:[#allocation4]] %s0
  $region1: #{tpu_custom_call.1} parent=0
    #allocation5 [shape = 'u8[32768]{0}', space=vmem, size = 0x8000, scoped, tag = 'input window, operand 1']
    #allocation6 [shape = 's32[2]{0}', space=sflag, size = 0x8, scoped, tag = 'scoped memory for tpu_custom_call.1']
    #allocation7 [shape = 's32[2]{0}', space=sflag, size = 0x8, scoped, tag = 'scoped memory for tpu_custom_call.1']
    #allocation8 [shape = 'u8[98304]{0}', space=vmem, size = 0x18000, scoped, tag = 'input window, operand 2, single buffered']
    #allocation9 [shape = 's32[1]{0}', space=sflag, size = 0x4, scoped, tag = 'scoped memory for tpu_custom_call.1']
    #allocation10 [shape = 'u8[32768]{0}', space=vmem, size = 0x8000, scoped, tag = 'output window, operand 0']
    %10 = vsyncpa [#allocation6], 0
    %s11 = scalar_lea.sflag [#allocation6], 1
    %12 = vsyncpa %s11, 0
    %13 = vsyncpa [#allocation9], 0
    %14 = vsyncpa [#allocation7], 0
    %s15 = scalar_lea.sflag [#allocation7], 1
    %16 = vsyncpa %s15, 0
    loop: start=0, step=1, limit=4
    $region2: #{tpu_custom_call.1} parent=1 // loop_pre_header
      _
    $region3: #{tpu_custom_call.1} parent=1 // loop_header
      %s18 = sphi 0, %s22
      %p19 = scmp.ge.s32.totalorder %s18, 4
      %s28 = sphi 0, %s30
      %s31 = sphi 0, %s28
      %s32 = sphi 0, %s31
      %s48 = sphi 0, %s32
      %s52 = sphi 0, %s52
      %s54 = sphi 0, %s52
      %s55 = sphi 0, %s54
      %s69 = sphi 0, %s55
      %s73 = sphi 0, %s73
      %s75 = sphi 0, %s73
      %s76 = sphi 0, %s75
      %s90 = sphi 0, %s76
      %s96 = sphi 0, %s98
      %s99 = sphi 0, %s96
      %s100 = sphi 0, %s99
      %s116 = sphi 0, %s100
    $region4: #{tpu_custom_call.1} parent=1 // loop_header_branch
      %21 = sbr.rel (%p19) target = $region8
    $region5: #{tpu_custom_call.1} parent=1 // loop_body
      %s23 = ssub.s32 %s18, 1
      %s24 = ssub.s32 %s18, 2
      %s25 = sadd.s32 %s18, 1
      %s26 = ssub.s32 %s18, %s25
      %p27 = scmp.eq.s32.totalorder %s26, 0
      %s29 = sadd.s32 %s28, 1
      %s30 = scalar_select %p27, %s28, %s29
      %p33 = pneg %p27
      %p34 = scmp.eq.s32.totalorder %s18, 1
      %p35 = por %p33, %p34
      %p36 = scmp.ne.s32.totalorder %s28, %s31
      %p37 = scmp.eq.s32.totalorder %s18, 0
      %p38 = por %p36, %p37
      %p39 = scmp.ne.s32.totalorder %s28, %s31
      %p40 = scmp.eq.s32.totalorder %s23, 1
      %p41 = por %p39, %p40
      %p42 = scmp.ne.s32.totalorder %s31, %s32
      %p43 = scmp.eq.s32.totalorder %s23, 0
      %p44 = por %p42, %p43
      %p45 = scmp.ne.s32.totalorder %s31, %s32
      %p46 = scmp.eq.s32.totalorder %s24, 1
      %p47 = por %p45, %p46
      %p49 = scmp.ne.s32.totalorder %s32, %s48
      %p50 = scmp.eq.s32.totalorder %s24, 0
      %p51 = por %p49, %p50
      %s53 = sadd.s32 %s52, 1
      %p56 = scmp.eq.s32.totalorder %s18, 1
      %p57 = scmp.ne.s32.totalorder %s52, %s54
      %p58 = scmp.eq.s32.totalorder %s18, 0
      %p59 = por %p57, %p58
      %p60 = scmp.ne.s32.totalorder %s52, %s54
      %p61 = scmp.eq.s32.totalorder %s23, 1
      %p62 = por %p60, %p61
      %p63 = scmp.ne.s32.totalorder %s54, %s55
      %p64 = scmp.eq.s32.totalorder %s23, 0
      %p65 = por %p63, %p64
      %p66 = scmp.ne.s32.totalorder %s54, %s55
      %p67 = scmp.eq.s32.totalorder %s24, 1
      %p68 = por %p66, %p67
      %p70 = scmp.ne.s32.totalorder %s55, %s69
      %p71 = scmp.eq.s32.totalorder %s24, 0
      %p72 = por %p70, %p71
      %s74 = sadd.s32 %s73, 1
      %p77 = scmp.eq.s32.totalorder %s18, 1
      %p78 = scmp.ne.s32.totalorder %s73, %s75
      %p79 = scmp.eq.s32.totalorder %s18, 0
      %p80 = por %p78, %p79
      %p81 = scmp.ne.s32.totalorder %s73, %s75
      %p82 = scmp.eq.s32.totalorder %s23, 1
      %p83 = por %p81, %p82
      %p84 = scmp.ne.s32.totalorder %s75, %s76
      %p85 = scmp.eq.s32.totalorder %s23, 0
      %p86 = por %p84, %p85
      %p87 = scmp.ne.s32.totalorder %s75, %s76
      %p88 = scmp.eq.s32.totalorder %s24, 1
      %p89 = por %p87, %p88
      %p91 = scmp.ne.s32.totalorder %s76, %s90
      %p92 = scmp.eq.s32.totalorder %s24, 0
      %p93 = por %p91, %p92
      %s94 = ssub.s32 %s18, %s25
      %p95 = scmp.eq.s32.totalorder %s94, 0
      %s97 = sadd.s32 %s96, 1
      %s98 = scalar_select %p95, %s96, %s97
      %p101 = pneg %p95
      %p102 = scmp.eq.s32.totalorder %s18, 1
      %p103 = por %p101, %p102
      %p104 = scmp.ne.s32.totalorder %s96, %s99
      %p105 = scmp.eq.s32.totalorder %s18, 0
      %p106 = por %p104, %p105
      %p107 = scmp.ne.s32.totalorder %s96, %s99
      %p108 = scmp.eq.s32.totalorder %s23, 1
      %p109 = por %p107, %p108
      %p110 = scmp.ne.s32.totalorder %s99, %s100
      %p111 = scmp.eq.s32.totalorder %s23, 0
      %p112 = por %p110, %p111
      %p113 = scmp.ne.s32.totalorder %s99, %s100
      %p114 = scmp.eq.s32.totalorder %s24, 1
      %p115 = por %p113, %p114
      %p117 = scmp.ne.s32.totalorder %s100, %s116
      %p118 = scmp.eq.s32.totalorder %s24, 0
      %p119 = por %p117, %p118
      %p120 = scmp.le.s32.totalorder 1, %s18
      %p121 = scmp.lt.s32.totalorder %s18, 3
      %p122 = pnand %p120, %p121
      %p123 = pneg %p122
      // Predicated region
      $region9: #{tpu_custom_call.1} parent=5 // pred_check
        _
      $region10: #{tpu_custom_call.1} parent=5 // pred_check_branch
        %125 = sbr.rel (%p122) target = $region12
      $region11: #{tpu_custom_call.1} parent=5 // pred_region
        %s126 = ssub.s32 %s18, 1
        // Predicated region
        $region13: #{tpu_custom_call.1} parent=11 // pred_check
          %p127 = pneg %p65
        $region14: #{tpu_custom_call.1} parent=11 // pred_check_branch
          %129 = sbr.rel (%p127) target = $region16
        $region15: #{tpu_custom_call.1} parent=11 // pred_region
          %s131 = ssub.s32 3072, 3072
          %132 = vsyncadd [#allocation9], %s131
          %s133 = sshll.u32 [#allocation8], 4
          %s134 = int_to_ptr.vmem [resolvable:$true] %s133
          %139 = dma.hbm_to_vmem [thread:$0]  %s2, 3072, %s134, [#allocation9], 192, 192, 12
        $region16: #{tpu_custom_call.1} parent=11 // pred_fallthru
          _
        // Predicated region
        $region17: #{tpu_custom_call.1} parent=11 // pred_check
          %p140 = pneg %p86
        $region18: #{tpu_custom_call.1} parent=11 // pred_check_branch
          %142 = sbr.rel (%p140) target = $region20
        $region19: #{tpu_custom_call.1} parent=11 // pred_region
          _
        $region20: #{tpu_custom_call.1} parent=11 // pred_fallthru
          _
      $region12: #{tpu_custom_call.1} parent=5 // pred_fallthru
        _
      %p143 = scmp.lt.s32.totalorder %s18, 2
      // Predicated region
      $region21: #{tpu_custom_call.1} parent=5 // pred_check
        %p144 = pneg %p143
      $region22: #{tpu_custom_call.1} parent=5 // pred_check_branch
        %146 = sbr.rel (%p144) target = $region24
      $region23: #{tpu_custom_call.1} parent=5 // pred_region
        // Predicated region
        $region25: #{tpu_custom_call.1} parent=23 // pred_check
          %p147 = pneg %p38
        $region26: #{tpu_custom_call.1} parent=23 // pred_check_branch
          %149 = sbr.rel (%p147) target = $region28
        $region27: #{tpu_custom_call.1} parent=23 // pred_region
          %s150 = sand.u32 %s28, 1
          %s151 = scalar_lea.sflag [#allocation6], %s150
          %s152 = sand.u32 %s28, 1
          %s153 = smul.addr %s152, 32
          %s154 = scalar_lea.vmem [#allocation5], %s153
          %s155 = smul.u32 2, %s18
          %s157 = ssub.s32 512, 512
          %158 = vsyncadd %s151, %s157
          %s159 = smul.addr %s155, 2
          %s160 = smul.addr %s159, 128
          %s161 = scalar_lea.hbm %s1, %s160
          %s162 = sshll.u32 %s154, 4
          %s163 = int_to_ptr.vmem [resolvable:$true] %s162
          %168 = dma.hbm_to_vmem [thread:$0]  %s161, 512, %s163, %s151, 128, 128, 8
        $region28: #{tpu_custom_call.1} parent=23 // pred_fallthru
          _
      $region24: #{tpu_custom_call.1} parent=5 // pred_fallthru
        _
      %p169 = scmp.le.s32.totalorder 1, %s18
      %p170 = scmp.lt.s32.totalorder %s18, 3
      %p171 = pnand %p169, %p170
      %p172 = pneg %p171
      // Predicated region
      $region29: #{tpu_custom_call.1} parent=5 // pred_check
        _
      $region30: #{tpu_custom_call.1} parent=5 // pred_check_branch
        %174 = sbr.rel (%p171) target = $region32
      $region31: #{tpu_custom_call.1} parent=5 // pred_region
        %s175 = ssub.s32 %s18, 1
        %s176 = sand.u32 %s31, 1
        %s177 = scalar_lea.sflag [#allocation6], %s176
        %s178 = sand.u32 %s31, 1
        %s179 = smul.addr %s178, 32
        %s180 = scalar_lea.vmem [#allocation5], %s179
        // Predicated region
        $region33: #{tpu_custom_call.1} parent=31 // pred_check
          %p181 = pneg %p44
        $region34: #{tpu_custom_call.1} parent=31 // pred_check_branch
          %183 = sbr.rel (%p181) target = $region36
        $region35: #{tpu_custom_call.1} parent=31 // pred_region
          %184 = dma.done %s177, 512
        $region36: #{tpu_custom_call.1} parent=31 // pred_fallthru
          _
        // Predicated region
        $region37: #{tpu_custom_call.1} parent=31 // pred_check
          %p185 = pneg %p65
        $region38: #{tpu_custom_call.1} parent=31 // pred_check_branch
          %187 = sbr.rel (%p185) target = $region40
        $region39: #{tpu_custom_call.1} parent=31 // pred_region
          %188 = dma.done [#allocation9], 3072
        $region40: #{tpu_custom_call.1} parent=31 // pred_fallthru
          _
        %s189 = sand.u32 %s31, 1
        %s190 = scalar_lea.sflag [#allocation6], %s189
        %s191 = sand.u32 %s31, 1
        %s192 = smul.addr %s191, 32
        %s193 = scalar_lea.vmem [#allocation5], %s192
        %p194 = pneg %p44
        %p195 = pneg %p41
        %p196 = pneg %p65
        %p197 = pneg %p62
        %p198 = pneg %p86
        %p199 = pneg %p83
        %p200 = pneg %p112
        %p201 = pneg %p109
        %s202 = sand.u32 %s99, 1
        %s203 = scalar_lea.sflag [#allocation7], %s202
        %s204 = sand.u32 %s99, 1
        %s205 = smul.addr %s204, 32
        %s206 = scalar_lea.vmem [#allocation10], %s205
        %s207 = smul.u32 2, %s23
        %s208 = smul.u32 2, %s23
        %s210 = sld [smem:[#allocation4]]
        %v211 = vld [vmem:[#allocation8] sm:$0xff]
        %v212 = vld [vmem:[#allocation8 + $0xc] sm:$0xff]
        %v213 = vld [vmem:[#allocation8 + $0x18] sm:$0xff]
        %v214 = vld [vmem:[#allocation8 + $0x24] sm:$0xff]
        %v215 = vld [vmem:[#allocation8 + $0x30] sm:$0xff]
        %v216 = vld [vmem:[#allocation8 + $0x3c] sm:$0xff]
        %v217 = vld [vmem:[#allocation8 + $0x48] sm:$0xff]
        %v218 = vld [vmem:[#allocation8 + $0x54] sm:$0xff]
        %v219 = vld [vmem:[#allocation8 + $0x60] sm:$0xff]
        %v220 = vld [vmem:[#allocation8 + $0x6c] sm:$0xff]
        %v221 = vld [vmem:[#allocation8 + $0x78] sm:$0xff]
        %v222 = vld [vmem:[#allocation8 + $0x84] sm:$0xff]
        %v223 = vld [vmem:[#allocation8 + $0x90] sm:$0xff]
        %v224 = vld [vmem:[#allocation8 + $0x9c] sm:$0xff]
        %v225 = vld [vmem:[#allocation8 + $0xa8] sm:$0xff]
        %v226 = vld [vmem:[#allocation8 + $0xb4] sm:$0xff]
        %v227 = vld [vmem:[#allocation8 + $0x8] sm:$0xf]
        %v228 = vld [vmem:[#allocation8 + $0x14] sm:$0xf]
        %v229 = vld [vmem:[#allocation8 + $0x20] sm:$0xf]
        %v230 = vld [vmem:[#allocation8 + $0x2c] sm:$0xf]
        %v231 = vld [vmem:[#allocation8 + $0x38] sm:$0xf]
        %v232 = vld [vmem:[#allocation8 + $0x44] sm:$0xf]
        %v233 = vld [vmem:[#allocation8 + $0x50] sm:$0xf]
        %v234 = vld [vmem:[#allocation8 + $0x5c] sm:$0xf]
        %v235 = vld [vmem:[#allocation8 + $0x68] sm:$0xf]
        %v236 = vld [vmem:[#allocation8 + $0x74] sm:$0xf]
        %v237 = vld [vmem:[#allocation8 + $0x80] sm:$0xf]
        %v238 = vld [vmem:[#allocation8 + $0x8c] sm:$0xf]
        %v239 = vld [vmem:[#allocation8 + $0x98] sm:$0xf]
        %v240 = vld [vmem:[#allocation8 + $0xa4] sm:$0xf]
        %v241 = vld [vmem:[#allocation8 + $0xb0] sm:$0xf]
        %v242 = vld [vmem:[#allocation8 + $0xbc] sm:$0xf]
        %v243 = vld [vmem:[%s3] sm:$0x1]
        %v244 = vld [vmem:[%s3 + $0x1] sm:$0x1]
        %v245 = vld [vmem:[%s3 + $0x2] sm:$0x1]
        %v246 = vld [vmem:[%s180] sm:$0xff]
        %v247 = vld [vmem:[%s180 + $0x8] sm:$0xff]
        %v248 = vpack.c.bf16 %v247, %v246
        %v265 = vunpack.c.l.b16 %v211
        %v266 = vunpack.c.h.b16 %v211
        %v267 = vunpack.c.l.b16 %v212
        %v268 = vunpack.c.h.b16 %v212
        %v269 = vunpack.c.l.b16 %v213
        %v270 = vunpack.c.h.b16 %v213
        %v271 = vunpack.c.l.b16 %v214
        %v272 = vunpack.c.h.b16 %v214
        %v273 = vunpack.c.l.b16 %v215
        %v274 = vunpack.c.h.b16 %v215
        %v275 = vunpack.c.l.b16 %v216
        %v276 = vunpack.c.h.b16 %v216
        %v277 = vunpack.c.l.b16 %v217
        %v278 = vunpack.c.h.b16 %v217
        %v279 = vunpack.c.l.b16 %v218
        %v280 = vunpack.c.h.b16 %v218
        %v281 = vunpack.c.l.b16 %v219
        %v282 = vunpack.c.h.b16 %v219
        %v283 = vunpack.c.l.b16 %v220
        %v284 = vunpack.c.h.b16 %v220
        %v285 = vunpack.c.l.b16 %v221
        %v286 = vunpack.c.h.b16 %v221
        %v287 = vunpack.c.l.b16 %v222
        %v288 = vunpack.c.h.b16 %v222
        %v289 = vunpack.c.l.b16 %v223
        %v290 = vunpack.c.h.b16 %v223
        %v291 = vunpack.c.l.b16 %v224
        %v292 = vunpack.c.h.b16 %v224
        %v293 = vunpack.c.l.b16 %v225
        %v294 = vunpack.c.h.b16 %v225
        %v295 = vunpack.c.l.b16 %v226
        %v296 = vunpack.c.h.b16 %v226
        %v297 = vpack.c.b16 %v267, %v265
        %v298 = vpack.c.b16 %v268, %v266
        %v299 = vpack.c.b16 %v271, %v269
        %v300 = vpack.c.b16 %v272, %v270
        %v301 = vpack.c.b16 %v275, %v273
        %v302 = vpack.c.b16 %v276, %v274
        %v303 = vpack.c.b16 %v279, %v277
        %v304 = vpack.c.b16 %v280, %v278
        %v305 = vpack.c.b16 %v283, %v281
        %v306 = vpack.c.b16 %v284, %v282
        %v307 = vpack.c.b16 %v287, %v285
        %v308 = vpack.c.b16 %v288, %v286
        %v309 = vpack.c.b16 %v291, %v289
        %v310 = vpack.c.b16 %v292, %v290
        %v311 = vpack.c.b16 %v295, %v293
        %v312 = vpack.c.b16 %v296, %v294
        %329 = vmatprep.subr.bf16.mxu0 %v298
        %330 = vmatpush1.bf16.msra.mxu0 %v297
        %331 = vmatprep.subr.bf16.mxu0 %v300
        %332 = vmatpush1.bf16.msra.mxu0 %v299
        %333 = vmatprep.subr.bf16.mxu0 %v302
        %334 = vmatpush1.bf16.msra.mxu0 %v301
        %335 = vmatprep.subr.bf16.mxu0 %v304
        %336 = vmatpush1.bf16.msra.mxu0 %v303
        %337 = vmatprep.subr.bf16.mxu0 %v306
        %338 = vmatpush1.bf16.msra.mxu0 %v305
        %339 = vmatprep.subr.bf16.mxu0 %v308
        %340 = vmatpush1.bf16.msra.mxu0 %v307
        %341 = vmatprep.subr.bf16.mxu0 %v310
        %342 = vmatpush1.bf16.msra.mxu0 %v309
        %343 = vmatprep.subr.bf16.mxu0 %v312
        %344 = vmatpush1.bf16.msra.mxu0 %v311
        %345 = vmatprep.subr.bf16.mxu0 0
        %346 = vmatpush1.bf16.msra.mxu0 0
        %347 = vmatprep.subr.bf16.mxu0 0
        %348 = vmatpush1.bf16.msra.mxu0 0
        %349 = vmatprep.subr.bf16.mxu0 0
        %350 = vmatpush1.bf16.msra.mxu0 0
        %351 = vmatprep.subr.bf16.mxu0 0
        %352 = vmatpush1.bf16.msra.mxu0 0
        %353 = vmatprep.subr.bf16.mxu0 0
        %354 = vmatpush1.bf16.msra.mxu0 0
        %355 = vmatprep.subr.bf16.mxu0 0
        %356 = vmatpush1.bf16.msra.mxu0 0
        %357 = vmatprep.subr.bf16.mxu0 0
        %358 = vmatpush1.bf16.msra.mxu0 0
        %359 = vmatprep.subr.bf16.mxu0 0
        %360 = vmatpush1.bf16.msra.mxu0 0
        %361 = vmatprep.mubr.bf16.mxu0 0
        %362 = vmatmul.mubr.bf16.gmra.mrb[0].mxu0 %v248
        %v363 = vpop.f32.mrb[0].mxu0
        %v364 = vadd.f32 0.0, %v363
        %v365 = vpop.f32.mrb[0].mxu0
        %v366 = vadd.f32 0.0, %v365
        %v367 = vpop.f32.mrb[0].mxu0
        %v368 = vadd.f32 0.0, %v367
        %v369 = vpop.f32.mrb[0].mxu0
        %v370 = vadd.f32 0.0, %v369
        %371 = vdwg.mxu0
        %v373 = vlaneseq
        %v374 = vshrl.u32 %v373, 7
        %v375 = vsub.s32 0, %v374
        %v376 = vrot.slane %v243, %v375
        %v378 = vadd.f32 %v364, %v376
        %v379 = vadd.f32 %v368, %v376
        %v380 = vpack.c.bf16 %v379, %v378
        %v382 = vlaneseq
        %v383 = vshrl.u32 %v382, 7
        %v384 = vsub.s32 0, %v383
        %v385 = vrot.slane %v244, %v384
        %v387 = vadd.f32 %v366, %v385
        %v388 = vadd.f32 %v370, %v385
        %v389 = vpack.c.bf16 %v388, %v387
        %390 = vxpose.xlu0.c.b16.start [1/8] %v380, 128
        %391 = vxpose.xlu0.c.b16.cont [2/8] 0, 128
        %392 = vxpose.xlu0.c.b16.cont [3/8] 0, 128
        %393 = vxpose.xlu0.c.b16.cont [4/8] 0, 128
        %394 = vxpose.xlu0.c.b16.cont [5/8] 0, 128
        %395 = vxpose.xlu0.c.b16.cont [6/8] 0, 128
        %396 = vxpose.xlu0.c.b16.cont [7/8] 0, 128
        %397 = vxpose.xlu0.c.b16.end [8/8] 0, 128
        %v398 = vpop.trf.xlu0
        %v399 = vpop.trf.xlu0
        %v400 = vpop.trf.xlu0
        %v401 = vpop.trf.xlu0
        %v402 = vpop.trf.xlu0
        %v403 = vpop.trf.xlu0
        %v404 = vpop.trf.xlu0
        %v405 = vpop.trf.xlu0
        %vm406 = vcmask 130048
        %v408 = vsel %vm406, %v398, 0
        %v411 = vsel %vm406, %v399, 0
        %v414 = vsel %vm406, %v400, 0
        %v417 = vsel %vm406, %v401, 0
        %v420 = vsel %vm406, %v402, 0
        %v423 = vsel %vm406, %v403, 0
        %v426 = vsel %vm406, %v404, 0
        %v429 = vsel %vm406, %v405, 0
        %431 = vmatprep.subr.bf16.mxu0 0
        %432 = vmatpush1.bf16.msra.mxu0 %v389
        %433 = vmatprep.subr.bf16.mxu0 0
        %434 = vmatpush1.bf16.msra.mxu0 0
        %435 = vmatprep.subr.bf16.mxu0 0
        %436 = vmatpush1.bf16.msra.mxu0 0
        %437 = vmatprep.subr.bf16.mxu0 0
        %438 = vmatpush1.bf16.msra.mxu0 0
        %439 = vmatprep.subr.bf16.mxu0 0
        %440 = vmatpush1.bf16.msra.mxu0 0
        %441 = vmatprep.subr.bf16.mxu0 0
        %442 = vmatpush1.bf16.msra.mxu0 0
        %443 = vmatprep.subr.bf16.mxu0 0
        %444 = vmatpush1.bf16.msra.mxu0 0
        %445 = vmatprep.subr.bf16.mxu0 0
        %446 = vmatpush1.bf16.msra.mxu0 0
        %447 = vmatprep.subr.bf16.mxu0 0
        %448 = vmatpush1.bf16.msra.mxu0 0
        %449 = vmatprep.subr.bf16.mxu0 0
        %450 = vmatpush1.bf16.msra.mxu0 0
        %451 = vmatprep.subr.bf16.mxu0 0
        %452 = vmatpush1.bf16.msra.mxu0 0
        %453 = vmatprep.subr.bf16.mxu0 0
        %454 = vmatpush1.bf16.msra.mxu0 0
        %455 = vmatprep.subr.bf16.mxu0 0
        %456 = vmatpush1.bf16.msra.mxu0 0
        %457 = vmatprep.subr.bf16.mxu0 0
        %458 = vmatpush1.bf16.msra.mxu0 0
        %459 = vmatprep.subr.bf16.mxu0 0
        %460 = vmatpush1.bf16.msra.mxu0 0
        %461 = vmatprep.subr.bf16.mxu0 0
        %462 = vmatpush1.bf16.msra.mxu0 0
        %463 = vmatprep.mubr.bf16.mxu0 0
        %464 = vmatmul.mubr.bf16.gmra.mrb[0].mxu0 %v408
        %v465 = vpop.f32.mrb[0].mxu0
        %v466 = vadd.f32 0.0, %v465
        %v467 = vpop.f32.mrb[0].mxu0
        %v468 = vpop.f32.mrb[0].mxu0
        %v469 = vadd.f32 0.0, %v468
        %v470 = vpop.f32.mrb[0].mxu0
        %471 = vmatprep.mubr.bf16.mxu0 0
        %472 = vmatmul.mubr.bf16.gmra.mrb[0].mxu0 %v411
        %v473 = vpop.f32.mrb[0].mxu0
        %v474 = vadd.f32 0.0, %v473
        %v475 = vpop.f32.mrb[0].mxu0
        %v476 = vpop.f32.mrb[0].mxu0
        %v477 = vadd.f32 0.0, %v476
        %v478 = vpop.f32.mrb[0].mxu0
        %479 = vmatprep.mubr.bf16.mxu0 0
        %480 = vmatmul.mubr.bf16.gmra.mrb[0].mxu0 %v414
        %v481 = vpop.f32.mrb[0].mxu0
        %v482 = vadd.f32 0.0, %v481
        %v483 = vpop.f32.mrb[0].mxu0
        %v484 = vpop.f32.mrb[0].mxu0
        %v485 = vadd.f32 0.0, %v484
        %v486 = vpop.f32.mrb[0].mxu0
        %487 = vmatprep.mubr.bf16.mxu0 0
        %488 = vmatmul.mubr.bf16.gmra.mrb[0].mxu0 %v417
        %v489 = vpop.f32.mrb[0].mxu0
        %v490 = vadd.f32 0.0, %v489
        %v491 = vpop.f32.mrb[0].mxu0
        %v492 = vpop.f32.mrb[0].mxu0
        %v493 = vadd.f32 0.0, %v492
        %v494 = vpop.f32.mrb[0].mxu0
        %495 = vmatprep.mubr.bf16.mxu0 0
        %496 = vmatmul.mubr.bf16.gmra.mrb[0].mxu0 %v420
        %v497 = vpop.f32.mrb[0].mxu0
        %v498 = vadd.f32 0.0, %v497
        %v499 = vpop.f32.mrb[0].mxu0
        %v500 = vpop.f32.mrb[0].mxu0
        %v501 = vadd.f32 0.0, %v500
        %v502 = vpop.f32.mrb[0].mxu0
        %503 = vmatprep.mubr.bf16.mxu0 0
        %504 = vmatmul.mubr.bf16.gmra.mrb[0].mxu0 %v423
        %v505 = vpop.f32.mrb[0].mxu0
        %v506 = vadd.f32 0.0, %v505
        %v507 = vpop.f32.mrb[0].mxu0
        %v508 = vpop.f32.mrb[0].mxu0
        %v509 = vadd.f32 0.0, %v508
        %v510 = vpop.f32.mrb[0].mxu0
        %511 = vmatprep.mubr.bf16.mxu0 0
        %512 = vmatmul.mubr.bf16.gmra.mrb[0].mxu0 %v426
        %v513 = vpop.f32.mrb[0].mxu0
        %v514 = vadd.f32 0.0, %v513
        %v515 = vpop.f32.mrb[0].mxu0
        %v516 = vpop.f32.mrb[0].mxu0
        %v517 = vadd.f32 0.0, %v516
        %v518 = vpop.f32.mrb[0].mxu0
        %519 = vmatprep.mubr.bf16.mxu0 0
        %520 = vmatmul.mubr.bf16.gmra.mrb[0].mxu0 %v429
        %v521 = vpop.f32.mrb[0].mxu0
        %v522 = vadd.f32 0.0, %v521
        %v523 = vpop.f32.mrb[0].mxu0
        %v524 = vpop.f32.mrb[0].mxu0
        %v525 = vadd.f32 0.0, %v524
        %v526 = vpop.f32.mrb[0].mxu0
        %527 = vdwg.mxu0
        %528 = vst [vmem:[#allocation2] sm:$0xff] %v466
        %529 = vst [vmem:[#allocation2 + $0x8] sm:$0xff] %v469
        %530 = vst [vmem:[#allocation2 + $0x10] sm:$0xff] %v474
        %531 = vst [vmem:[#allocation2 + $0x18] sm:$0xff] %v477
        %532 = vst [vmem:[#allocation2 + $0x20] sm:$0xff] %v482
        %533 = vst [vmem:[#allocation2 + $0x28] sm:$0xff] %v485
        %534 = vst [vmem:[#allocation2 + $0x30] sm:$0xff] %v490
        %535 = vst [vmem:[#allocation2 + $0x38] sm:$0xff] %v493
        %536 = vst [vmem:[#allocation2 + $0x40] sm:$0xff] %v498
        %537 = vst [vmem:[#allocation2 + $0x48] sm:$0xff] %v501
        %538 = vst [vmem:[#allocation2 + $0x50] sm:$0xff] %v506
        %539 = vst [vmem:[#allocation2 + $0x58] sm:$0xff] %v509
        %540 = vst [vmem:[#allocation2 + $0x60] sm:$0xff] %v514
        %541 = vst [vmem:[#allocation2 + $0x68] sm:$0xff] %v517
        %542 = vst [vmem:[#allocation2 + $0x70] sm:$0xff] %v522
        %543 = vst [vmem:[#allocation2 + $0x78] sm:$0xff] %v525
        %v544 = vld [vmem:[#allocation2] sm:$0xff]
        %v545 = vld [vmem:[#allocation2 + $0x8] sm:$0xff]
        %v546 = vld [vmem:[#allocation2 + $0x10] sm:$0xff]
        %v547 = vld [vmem:[#allocation2 + $0x18] sm:$0xff]
        %v548 = vld [vmem:[#allocation2 + $0x20] sm:$0xff]
        %v549 = vld [vmem:[#allocation2 + $0x28] sm:$0xff]
        %v550 = vld [vmem:[#allocation2 + $0x30] sm:$0xff]
        %v551 = vld [vmem:[#allocation2 + $0x38] sm:$0xff]
        %v552 = vld [vmem:[#allocation2 + $0x40] sm:$0xff]
        %v553 = vld [vmem:[#allocation2 + $0x48] sm:$0xff]
        %v554 = vld [vmem:[#allocation2 + $0x50] sm:$0xff]
        %v555 = vld [vmem:[#allocation2 + $0x58] sm:$0xff]
        %v556 = vld [vmem:[#allocation2 + $0x60] sm:$0xff]
        %v557 = vld [vmem:[#allocation2 + $0x68] sm:$0xff]
        %v558 = vld [vmem:[#allocation2 + $0x70] sm:$0xff]
        %v559 = vld [vmem:[#allocation2 + $0x78] sm:$0xff]
        %v560 = vmax.f32 %v544, %v548
        %v561 = vmax.f32 %v545, %v549
        %v562 = vmax.f32 %v546, %v550
        %v563 = vmax.f32 %v547, %v551
        %v564 = vmax.f32 %v560, %v552
        %v565 = vmax.f32 %v561, %v553
        %v566 = vmax.f32 %v562, %v554
        %v567 = vmax.f32 %v563, %v555
        %v568 = vmax.f32 %v564, %v556
        %v569 = vmax.f32 %v565, %v557
        %v570 = vmax.f32 %v566, %v558
        %v571 = vmax.f32 %v567, %v559
        %v572 = vmax.f32 %v568, %v569
        %v573 = vmax.f32 %v570, %v571
        %v574 = vmax.f32 %v572, %v573
        %v575 = vrot.slane %v574, 4
        %v576 = vmax.f32 %v574, %v575
        %v577 = vrot.slane %v576, 2
        %v578 = vmax.f32 %v576, %v577
        %v579 = vrot.slane %v578, 1
        %v580 = vmax.f32 %v578, %v579
        %v581 = vsub.f32 %v544, %v580
        %v582 = vsub.f32 %v545, %v580
        %v583 = vsub.f32 %v546, %v580
        %v584 = vsub.f32 %v547, %v580
        %v585 = vsub.f32 %v548, %v580
        %v586 = vsub.f32 %v549, %v580
        %v587 = vsub.f32 %v550, %v580
        %v588 = vsub.f32 %v551, %v580
        %v589 = vsub.f32 %v552, %v580
        %v590 = vsub.f32 %v553, %v580
        %v591 = vsub.f32 %v554, %v580
        %v592 = vsub.f32 %v555, %v580
        %v593 = vsub.f32 %v556, %v580
        %v594 = vsub.f32 %v557, %v580
        %v595 = vsub.f32 %v558, %v580
        %v596 = vsub.f32 %v559, %v580
        %v597 = vmul.f32 %v581, 1.442695
        %v598 = vpow.pop %v597
        %v599 = vmul.f32 %v582, 1.442695
        %v600 = vpow.pop %v599
        %v601 = vmul.f32 %v583, 1.442695
        %v602 = vpow.pop %v601
        %v603 = vmul.f32 %v584, 1.442695
        %v604 = vpow.pop %v603
        %v605 = vmul.f32 %v585, 1.442695
        %v606 = vpow.pop %v605
        %v607 = vmul.f32 %v586, 1.442695
        %v608 = vpow.pop %v607
        %v609 = vmul.f32 %v587, 1.442695
        %v610 = vpow.pop %v609
        %v611 = vmul.f32 %v588, 1.442695
        %v612 = vpow.pop %v611
        %v613 = vmul.f32 %v589, 1.442695
        %v614 = vpow.pop %v613
        %v615 = vmul.f32 %v590, 1.442695
        %v616 = vpow.pop %v615
        %v617 = vmul.f32 %v591, 1.442695
        %v618 = vpow.pop %v617
        %v619 = vmul.f32 %v592, 1.442695
        %v620 = vpow.pop %v619
        %v621 = vmul.f32 %v593, 1.442695
        %v622 = vpow.pop %v621
        %v623 = vmul.f32 %v594, 1.442695
        %v624 = vpow.pop %v623
        %v625 = vmul.f32 %v595, 1.442695
        %v626 = vpow.pop %v625
        %v627 = vmul.f32 %v596, 1.442695
        %v628 = vpow.pop %v627
        %v629 = vadd.f32 %v598, %v600
        %v630 = vadd.f32 %v629, %v602
        %v631 = vadd.f32 %v630, %v604
        %v632 = vadd.f32 %v631, %v606
        %v633 = vadd.f32 %v632, %v608
        %v634 = vadd.f32 %v633, %v610
        %v635 = vadd.f32 %v634, %v612
        %v636 = vadd.f32 %v635, %v614
        %v637 = vadd.f32 %v636, %v616
        %v638 = vadd.f32 %v637, %v618
        %v639 = vadd.f32 %v638, %v620
        %v640 = vadd.f32 %v639, %v622
        %v641 = vadd.f32 %v640, %v624
        %v642 = vadd.f32 %v641, %v626
        %v643 = vadd.f32 %v642, %v628
        %v644 = vrot.slane %v643, 4
        %v645 = vadd.f32 %v643, %v644
        %v646 = vrot.slane %v645, 2
        %v647 = vadd.f32 %v645, %v646
        %v648 = vrot.slane %v647, 1
        %v649 = vadd.f32 %v647, %v648
        %v650 = vrcp.pop %v649
        %v651 = vmul.f32 %v598, %v650
        %v652 = vmul.f32 %v600, %v650
        %v653 = vmul.f32 %v602, %v650
        %v654 = vmul.f32 %v604, %v650
        %v655 = vmul.f32 %v606, %v650
        %v656 = vmul.f32 %v608, %v650
        %v657 = vmul.f32 %v610, %v650
        %v658 = vmul.f32 %v612, %v650
        %v659 = vmul.f32 %v614, %v650
        %v660 = vmul.f32 %v616, %v650
        %v661 = vmul.f32 %v618, %v650
        %v662 = vmul.f32 %v620, %v650
        %v663 = vmul.f32 %v622, %v650
        %v664 = vmul.f32 %v624, %v650
        %v665 = vmul.f32 %v626, %v650
        %v666 = vmul.f32 %v628, %v650
        %v667 = vstv %s210
        %v668 = vmul.f32 %v667, %v651
        %v669 = vmul.f32 %v667, %v652
        %v670 = vmul.f32 %v667, %v653
        %v671 = vmul.f32 %v667, %v654
        %v672 = vmul.f32 %v667, %v655
        %v673 = vmul.f32 %v667, %v656
        %v674 = vmul.f32 %v667, %v657
        %v675 = vmul.f32 %v667, %v658
        %v676 = vmul.f32 %v667, %v659
        %v677 = vmul.f32 %v667, %v660
        %v678 = vmul.f32 %v667, %v661
        %v679 = vmul.f32 %v667, %v662
        %v680 = vmul.f32 %v667, %v663
        %v681 = vmul.f32 %v667, %v664
        %v682 = vmul.f32 %v667, %v665
        %v683 = vmul.f32 %v667, %v666
        %v684 = vpack.c.bf16 %v669, %v668
        %v685 = vpack.c.bf16 %v671, %v670
        %v686 = vpack.c.bf16 %v673, %v672
        %v687 = vpack.c.bf16 %v675, %v674
        %v688 = vpack.c.bf16 %v677, %v676
        %v689 = vpack.c.bf16 %v679, %v678
        %v690 = vpack.c.bf16 %v681, %v680
        %v691 = vpack.c.bf16 %v683, %v682
        %v692 = vld [vmem:[%s180] sm:$0xff]
        %v693 = vld [vmem:[%s180 + $0x8] sm:$0xff]
        %v694 = vpack.c.bf16 %v693, %v692
        %v696 = vlaneseq
        %v697 = vshrl.u32 %v696, 7
        %v698 = vsub.s32 0, %v697
        %v699 = vrot.slane %v245, %v698
        %v717 = vunpack.c.l.b16 %v227
        %v718 = vunpack.c.l.b16 %v228
        %v719 = vunpack.c.l.b16 %v229
        %v720 = vunpack.c.l.b16 %v230
        %v721 = vunpack.c.l.b16 %v231
        %v722 = vunpack.c.l.b16 %v232
        %v723 = vunpack.c.l.b16 %v233
        %v724 = vunpack.c.l.b16 %v234
        %v725 = vunpack.c.l.b16 %v235
        %v726 = vunpack.c.l.b16 %v236
        %v727 = vunpack.c.l.b16 %v237
        %v728 = vunpack.c.l.b16 %v238
        %v729 = vunpack.c.l.b16 %v239
        %v730 = vunpack.c.l.b16 %v240
        %v731 = vunpack.c.l.b16 %v241
        %v732 = vunpack.c.l.b16 %v242
        %v733 = vpack.c.b16 %v718, %v717
        %v734 = vpack.c.b16 %v720, %v719
        %v735 = vpack.c.b16 %v722, %v721
        %v736 = vpack.c.b16 %v724, %v723
        %v737 = vpack.c.b16 %v726, %v725
        %v738 = vpack.c.b16 %v728, %v727
        %v739 = vpack.c.b16 %v730, %v729
        %v740 = vpack.c.b16 %v732, %v731
        %749 = vmatprep.subr.bf16.mxu0 0
        %750 = vmatpush1.bf16.msra.mxu0 %v733
        %751 = vmatprep.subr.bf16.mxu0 0
        %752 = vmatpush1.bf16.msra.mxu0 %v734
        %753 = vmatprep.subr.bf16.mxu0 0
        %754 = vmatpush1.bf16.msra.mxu0 %v735
        %755 = vmatprep.subr.bf16.mxu0 0
        %756 = vmatpush1.bf16.msra.mxu0 %v736
        %757 = vmatprep.subr.bf16.mxu0 0
        %758 = vmatpush1.bf16.msra.mxu0 %v737
        %759 = vmatprep.subr.bf16.mxu0 0
        %760 = vmatpush1.bf16.msra.mxu0 %v738
        %761 = vmatprep.subr.bf16.mxu0 0
        %762 = vmatpush1.bf16.msra.mxu0 %v739
        %763 = vmatprep.subr.bf16.mxu0 0
        %764 = vmatpush1.bf16.msra.mxu0 %v740
        %765 = vmatprep.subr.bf16.mxu0 0
        %766 = vmatpush1.bf16.msra.mxu0 0
        %767 = vmatprep.subr.bf16.mxu0 0
        %768 = vmatpush1.bf16.msra.mxu0 0
        %769 = vmatprep.subr.bf16.mxu0 0
        %770 = vmatpush1.bf16.msra.mxu0 0
        %771 = vmatprep.subr.bf16.mxu0 0
        %772 = vmatpush1.bf16.msra.mxu0 0
        %773 = vmatprep.subr.bf16.mxu0 0
        %774 = vmatpush1.bf16.msra.mxu0 0
        %775 = vmatprep.subr.bf16.mxu0 0
        %776 = vmatpush1.bf16.msra.mxu0 0
        %777 = vmatprep.subr.bf16.mxu0 0
        %778 = vmatpush1.bf16.msra.mxu0 0
        %779 = vmatprep.subr.bf16.mxu0 0
        %780 = vmatpush1.bf16.msra.mxu0 0
        %781 = vmatprep.mubr.bf16.mxu0 0
        %782 = vmatmul.mubr.bf16.gmra.mrb[0].mxu0 %v694
        %v783 = vpop.f32.mrb[0].mxu0
        %v784 = vadd.f32 %v699, %v783
        %v785 = vpop.f32.mrb[0].mxu0
        %v786 = vpop.f32.mrb[0].mxu0
        %v787 = vadd.f32 %v699, %v786
        %v788 = vpop.f32.mrb[0].mxu0
        %789 = vdwg.mxu0
        %v790 = vpack.c.bf16 %v787, %v784
        %791 = vmatprep.subr.bf16.mxu0 0
        %792 = vmatpush1.bf16.msra.mxu0 %v684
        %793 = vmatprep.subr.bf16.mxu0 0
        %794 = vmatpush1.bf16.msra.mxu0 %v685
        %795 = vmatprep.subr.bf16.mxu0 0
        %796 = vmatpush1.bf16.msra.mxu0 %v686
        %797 = vmatprep.subr.bf16.mxu0 0
        %798 = vmatpush1.bf16.msra.mxu0 %v687
        %799 = vmatprep.subr.bf16.mxu0 0
        %800 = vmatpush1.bf16.msra.mxu0 %v688
        %801 = vmatprep.subr.bf16.mxu0 0
        %802 = vmatpush1.bf16.msra.mxu0 %v689
        %803 = vmatprep.subr.bf16.mxu0 0
        %804 = vmatpush1.bf16.msra.mxu0 %v690
        %805 = vmatprep.subr.bf16.mxu0 0
        %806 = vmatpush1.bf16.msra.mxu0 %v691
        %807 = vmatprep.subr.bf16.mxu0 0
        %808 = vmatpush1.bf16.msra.mxu0 0
        %809 = vmatprep.subr.bf16.mxu0 0
        %810 = vmatpush1.bf16.msra.mxu0 0
        %811 = vmatprep.subr.bf16.mxu0 0
        %812 = vmatpush1.bf16.msra.mxu0 0
        %813 = vmatprep.subr.bf16.mxu0 0
        %814 = vmatpush1.bf16.msra.mxu0 0
        %815 = vmatprep.subr.bf16.mxu0 0
        %816 = vmatpush1.bf16.msra.mxu0 0
        %817 = vmatprep.subr.bf16.mxu0 0
        %818 = vmatpush1.bf16.msra.mxu0 0
        %819 = vmatprep.subr.bf16.mxu0 0
        %820 = vmatpush1.bf16.msra.mxu0 0
        %821 = vmatprep.subr.bf16.mxu0 0
        %822 = vmatpush1.bf16.msra.mxu0 0
        %823 = vmatprep.mubr.bf16.mxu0 0
        %824 = vmatmul.mubr.bf16.gmra.mrb[0].mxu0 %v790
        %v825 = vpop.f32.mrb[0].mxu0
        %v826 = vadd.f32 0.0, %v825
        %v827 = vpop.f32.mrb[0].mxu0
        %v828 = vpop.f32.mrb[0].mxu0
        %v829 = vadd.f32 0.0, %v828
        %v830 = vpop.f32.mrb[0].mxu0
        %831 = vdwg.mxu0
        %v832 = vadd.f32 %v692, %v826
        %v833 = vadd.f32 %v693, %v829
        %834 = vst [vmem:[%s206] sm:$0xff] %v832
        %835 = vst [vmem:[%s206 + $0x8] sm:$0xff] %v833
        %s836 = scalar_lea.vmem %s180, 16 [#allocation5]
        %v837 = vld [vmem:[%s836] sm:$0xff]
        %v838 = vld [vmem:[%s836 + $0x8] sm:$0xff]
        %v839 = vpack.c.bf16 %v838, %v837
        %840 = vmatprep.subr.bf16.mxu0 %v298
        %841 = vmatpush1.bf16.msra.mxu0 %v297
        %842 = vmatprep.subr.bf16.mxu0 %v300
        %843 = vmatpush1.bf16.msra.mxu0 %v299
        %844 = vmatprep.subr.bf16.mxu0 %v302
        %845 = vmatpush1.bf16.msra.mxu0 %v301
        %846 = vmatprep.subr.bf16.mxu0 %v304
        %847 = vmatpush1.bf16.msra.mxu0 %v303
        %848 = vmatprep.subr.bf16.mxu0 %v306
        %849 = vmatpush1.bf16.msra.mxu0 %v305
        %850 = vmatprep.subr.bf16.mxu0 %v308
        %851 = vmatpush1.bf16.msra.mxu0 %v307
        %852 = vmatprep.subr.bf16.mxu0 %v310
        %853 = vmatpush1.bf16.msra.mxu0 %v309
        %854 = vmatprep.subr.bf16.mxu0 %v312
        %855 = vmatpush1.bf16.msra.mxu0 %v311
        %856 = vmatprep.subr.bf16.mxu0 0
        %857 = vmatpush1.bf16.msra.mxu0 0
        %858 = vmatprep.subr.bf16.mxu0 0
        %859 = vmatpush1.bf16.msra.mxu0 0
        %860 = vmatprep.subr.bf16.mxu0 0
        %861 = vmatpush1.bf16.msra.mxu0 0
        %862 = vmatprep.subr.bf16.mxu0 0
        %863 = vmatpush1.bf16.msra.mxu0 0
        %864 = vmatprep.subr.bf16.mxu0 0
        %865 = vmatpush1.bf16.msra.mxu0 0
        %866 = vmatprep.subr.bf16.mxu0 0
        %867 = vmatpush1.bf16.msra.mxu0 0
        %868 = vmatprep.subr.bf16.mxu0 0
        %869 = vmatpush1.bf16.msra.mxu0 0
        %870 = vmatprep.subr.bf16.mxu0 0
        %871 = vmatpush1.bf16.msra.mxu0 0
        %872 = vmatprep.mubr.bf16.mxu0 0
        %873 = vmatmul.mubr.bf16.gmra.mrb[0].mxu0 %v839
        %v874 = vpop.f32.mrb[0].mxu0
        %v875 = vadd.f32 0.0, %v874
        %v876 = vpop.f32.mrb[0].mxu0
        %v877 = vadd.f32 0.0, %v876
        %v878 = vpop.f32.mrb[0].mxu0
        %v879 = vadd.f32 0.0, %v878
        %v880 = vpop.f32.mrb[0].mxu0
        %v881 = vadd.f32 0.0, %v880
        %882 = vdwg.mxu0
        %v883 = vadd.f32 %v875, %v376
        %v884 = vadd.f32 %v879, %v376
        %v885 = vpack.c.bf16 %v884, %v883
        %v886 = vadd.f32 %v877, %v385
        %v887 = vadd.f32 %v881, %v385
        %v888 = vpack.c.bf16 %v887, %v886
        %889 = vxpose.xlu0.c.b16.start [1/8] %v885, 128
        %890 = vxpose.xlu0.c.b16.cont [2/8] 0, 128
        %891 = vxpose.xlu0.c.b16.cont [3/8] 0, 128
        %892 = vxpose.xlu0.c.b16.cont [4/8] 0, 128
        %893 = vxpose.xlu0.c.b16.cont [5/8] 0, 128
        %894 = vxpose.xlu0.c.b16.cont [6/8] 0, 128
        %895 = vxpose.xlu0.c.b16.cont [7/8] 0, 128
        %896 = vxpose.xlu0.c.b16.end [8/8] 0, 128
        %v897 = vpop.trf.xlu0
        %v898 = vpop.trf.xlu0
        %v899 = vpop.trf.xlu0
        %v900 = vpop.trf.xlu0
        %v901 = vpop.trf.xlu0
        %v902 = vpop.trf.xlu0
        %v903 = vpop.trf.xlu0
        %v904 = vpop.trf.xlu0
        %v906 = vsel %vm406, %v897, 0
        %v909 = vsel %vm406, %v898, 0
        %v912 = vsel %vm406, %v899, 0
        %v915 = vsel %vm406, %v900, 0
        %v918 = vsel %vm406, %v901, 0
        %v921 = vsel %vm406, %v902, 0
        %v924 = vsel %vm406, %v903, 0
        %v927 = vsel %vm406, %v904, 0
        %929 = vmatprep.subr.bf16.mxu0 0
        %930 = vmatpush1.bf16.msra.mxu0 %v888
        %931 = vmatprep.subr.bf16.mxu0 0
        %932 = vmatpush1.bf16.msra.mxu0 0
        %933 = vmatprep.subr.bf16.mxu0 0
        %934 = vmatpush1.bf16.msra.mxu0 0
        %935 = vmatprep.subr.bf16.mxu0 0
        %936 = vmatpush1.bf16.msra.mxu0 0
        %937 = vmatprep.subr.bf16.mxu0 0
        %938 = vmatpush1.bf16.msra.mxu0 0
        %939 = vmatprep.subr.bf16.mxu0 0
        %940 = vmatpush1.bf16.msra.mxu0 0
        %941 = vmatprep.subr.bf16.mxu0 0
        %942 = vmatpush1.bf16.msra.mxu0 0
        %943 = vmatprep.subr.bf16.mxu0 0
        %944 = vmatpush1.bf16.msra.mxu0 0
        %945 = vmatprep.subr.bf16.mxu0 0
        %946 = vmatpush1.bf16.msra.mxu0 0
        %947 = vmatprep.subr.bf16.mxu0 0
        %948 = vmatpush1.bf16.msra.mxu0 0
        %949 = vmatprep.subr.bf16.mxu0 0
        %950 = vmatpush1.bf16.msra.mxu0 0
        %951 = vmatprep.subr.bf16.mxu0 0
        %952 = vmatpush1.bf16.msra.mxu0 0
        %953 = vmatprep.subr.bf16.mxu0 0
        %954 = vmatpush1.bf16.msra.mxu0 0
        %955 = vmatprep.subr.bf16.mxu0 0
        %956 = vmatpush1.bf16.msra.mxu0 0
        %957 = vmatprep.subr.bf16.mxu0 0
        %958 = vmatpush1.bf16.msra.mxu0 0
        %959 = vmatprep.subr.bf16.mxu0 0
        %960 = vmatpush1.bf16.msra.mxu0 0
        %961 = vmatprep.mubr.bf16.mxu0 0
        %962 = vmatmul.mubr.bf16.gmra.mrb[0].mxu0 %v906
        %v963 = vpop.f32.mrb[0].mxu0
        %v964 = vadd.f32 0.0, %v963
        %v965 = vpop.f32.mrb[0].mxu0
        %v966 = vpop.f32.mrb[0].mxu0
        %v967 = vadd.f32 0.0, %v966
        %v968 = vpop.f32.mrb[0].mxu0
        %969 = vmatprep.mubr.bf16.mxu0 0
        %970 = vmatmul.mubr.bf16.gmra.mrb[0].mxu0 %v909
        %v971 = vpop.f32.mrb[0].mxu0
        %v972 = vadd.f32 0.0, %v971
        %v973 = vpop.f32.mrb[0].mxu0
        %v974 = vpop.f32.mrb[0].mxu0
        %v975 = vadd.f32 0.0, %v974
        %v976 = vpop.f32.mrb[0].mxu0
        %977 = vmatprep.mubr.bf16.mxu0 0
        %978 = vmatmul.mubr.bf16.gmra.mrb[0].mxu0 %v912
        %v979 = vpop.f32.mrb[0].mxu0
        %v980 = vadd.f32 0.0, %v979
        %v981 = vpop.f32.mrb[0].mxu0
        %v982 = vpop.f32.mrb[0].mxu0
        %v983 = vadd.f32 0.0, %v982
        %v984 = vpop.f32.mrb[0].mxu0
        %985 = vmatprep.mubr.bf16.mxu0 0
        %986 = vmatmul.mubr.bf16.gmra.mrb[0].mxu0 %v915
        %v987 = vpop.f32.mrb[0].mxu0
        %v988 = vadd.f32 0.0, %v987
        %v989 = vpop.f32.mrb[0].mxu0
        %v990 = vpop.f32.mrb[0].mxu0
        %v991 = vadd.f32 0.0, %v990
        %v992 = vpop.f32.mrb[0].mxu0
        %993 = vmatprep.mubr.bf16.mxu0 0
        %994 = vmatmul.mubr.bf16.gmra.mrb[0].mxu0 %v918
        %v995 = vpop.f32.mrb[0].mxu0
        %v996 = vadd.f32 0.0, %v995
        %v997 = vpop.f32.mrb[0].mxu0
        %v998 = vpop.f32.mrb[0].mxu0
        %v999 = vadd.f32 0.0, %v998
        %v1000 = vpop.f32.mrb[0].mxu0
        %1001 = vmatprep.mubr.bf16.mxu0 0
        %1002 = vmatmul.mubr.bf16.gmra.mrb[0].mxu0 %v921
        %v1003 = vpop.f32.mrb[0].mxu0
        %v1004 = vadd.f32 0.0, %v1003
        %v1005 = vpop.f32.mrb[0].mxu0
        %v1006 = vpop.f32.mrb[0].mxu0
        %v1007 = vadd.f32 0.0, %v1006
        %v1008 = vpop.f32.mrb[0].mxu0
        %1009 = vmatprep.mubr.bf16.mxu0 0
        %1010 = vmatmul.mubr.bf16.gmra.mrb[0].mxu0 %v924
        %v1011 = vpop.f32.mrb[0].mxu0
        %v1012 = vadd.f32 0.0, %v1011
        %v1013 = vpop.f32.mrb[0].mxu0
        %v1014 = vpop.f32.mrb[0].mxu0
        %v1015 = vadd.f32 0.0, %v1014
        %v1016 = vpop.f32.mrb[0].mxu0
        %1017 = vmatprep.mubr.bf16.mxu0 0
        %1018 = vmatmul.mubr.bf16.gmra.mrb[0].mxu0 %v927
        %v1019 = vpop.f32.mrb[0].mxu0
        %v1020 = vadd.f32 0.0, %v1019
        %v1021 = vpop.f32.mrb[0].mxu0
        %v1022 = vpop.f32.mrb[0].mxu0
        %v1023 = vadd.f32 0.0, %v1022
        %v1024 = vpop.f32.mrb[0].mxu0
        %1025 = vdwg.mxu0
        %1026 = vst [vmem:[#allocation2] sm:$0xff] %v964
        %1027 = vst [vmem:[#allocation2 + $0x8] sm:$0xff] %v967
        %1028 = vst [vmem:[#allocation2 + $0x10] sm:$0xff] %v972
        %1029 = vst [vmem:[#allocation2 + $0x18] sm:$0xff] %v975
        %1030 = vst [vmem:[#allocation2 + $0x20] sm:$0xff] %v980
        %1031 = vst [vmem:[#allocation2 + $0x28] sm:$0xff] %v983
        %1032 = vst [vmem:[#allocation2 + $0x30] sm:$0xff] %v988
        %1033 = vst [vmem:[#allocation2 + $0x38] sm:$0xff] %v991
        %1034 = vst [vmem:[#allocation2 + $0x40] sm:$0xff] %v996
        %1035 = vst [vmem:[#allocation2 + $0x48] sm:$0xff] %v999
        %1036 = vst [vmem:[#allocation2 + $0x50] sm:$0xff] %v1004
        %1037 = vst [vmem:[#allocation2 + $0x58] sm:$0xff] %v1007
        %1038 = vst [vmem:[#allocation2 + $0x60] sm:$0xff] %v1012
        %1039 = vst [vmem:[#allocation2 + $0x68] sm:$0xff] %v1015
        %1040 = vst [vmem:[#allocation2 + $0x70] sm:$0xff] %v1020
        %1041 = vst [vmem:[#allocation2 + $0x78] sm:$0xff] %v1023
        %v1042 = vld [vmem:[#allocation2] sm:$0xff]
        %v1043 = vld [vmem:[#allocation2 + $0x8] sm:$0xff]
        %v1044 = vld [vmem:[#allocation2 + $0x10] sm:$0xff]
        %v1045 = vld [vmem:[#allocation2 + $0x18] sm:$0xff]
        %v1046 = vld [vmem:[#allocation2 + $0x20] sm:$0xff]
        %v1047 = vld [vmem:[#allocation2 + $0x28] sm:$0xff]
        %v1048 = vld [vmem:[#allocation2 + $0x30] sm:$0xff]
        %v1049 = vld [vmem:[#allocation2 + $0x38] sm:$0xff]
        %v1050 = vld [vmem:[#allocation2 + $0x40] sm:$0xff]
        %v1051 = vld [vmem:[#allocation2 + $0x48] sm:$0xff]
        %v1052 = vld [vmem:[#allocation2 + $0x50] sm:$0xff]
        %v1053 = vld [vmem:[#allocation2 + $0x58] sm:$0xff]
        %v1054 = vld [vmem:[#allocation2 + $0x60] sm:$0xff]
        %v1055 = vld [vmem:[#allocation2 + $0x68] sm:$0xff]
        %v1056 = vld [vmem:[#allocation2 + $0x70] sm:$0xff]
        %v1057 = vld [vmem:[#allocation2 + $0x78] sm:$0xff]
        %v1058 = vmax.f32 %v1042, %v1046
        %v1059 = vmax.f32 %v1043, %v1047
        %v1060 = vmax.f32 %v1044, %v1048
        %v1061 = vmax.f32 %v1045, %v1049
        %v1062 = vmax.f32 %v1058, %v1050
        %v1063 = vmax.f32 %v1059, %v1051
        %v1064 = vmax.f32 %v1060, %v1052
        %v1065 = vmax.f32 %v1061, %v1053
        %v1066 = vmax.f32 %v1062, %v1054
        %v1067 = vmax.f32 %v1063, %v1055
        %v1068 = vmax.f32 %v1064, %v1056
        %v1069 = vmax.f32 %v1065, %v1057
        %v1070 = vmax.f32 %v1066, %v1067
        %v1071 = vmax.f32 %v1068, %v1069
        %v1072 = vmax.f32 %v1070, %v1071
        %v1073 = vrot.slane %v1072, 4
        %v1074 = vmax.f32 %v1072, %v1073
        %v1075 = vrot.slane %v1074, 2
        %v1076 = vmax.f32 %v1074, %v1075
        %v1077 = vrot.slane %v1076, 1
        %v1078 = vmax.f32 %v1076, %v1077
        %v1079 = vsub.f32 %v1042, %v1078
        %v1080 = vsub.f32 %v1043, %v1078
        %v1081 = vsub.f32 %v1044, %v1078
        %v1082 = vsub.f32 %v1045, %v1078
        %v1083 = vsub.f32 %v1046, %v1078
        %v1084 = vsub.f32 %v1047, %v1078
        %v1085 = vsub.f32 %v1048, %v1078
        %v1086 = vsub.f32 %v1049, %v1078
        %v1087 = vsub.f32 %v1050, %v1078
        %v1088 = vsub.f32 %v1051, %v1078
        %v1089 = vsub.f32 %v1052, %v1078
        %v1090 = vsub.f32 %v1053, %v1078
        %v1091 = vsub.f32 %v1054, %v1078
        %v1092 = vsub.f32 %v1055, %v1078
        %v1093 = vsub.f32 %v1056, %v1078
        %v1094 = vsub.f32 %v1057, %v1078
        %v1095 = vmul.f32 %v1079, 1.442695
        %v1096 = vpow.pop %v1095
        %v1097 = vmul.f32 %v1080, 1.442695
        %v1098 = vpow.pop %v1097
        %v1099 = vmul.f32 %v1081, 1.442695
        %v1100 = vpow.pop %v1099
        %v1101 = vmul.f32 %v1082, 1.442695
        %v1102 = vpow.pop %v1101
        %v1103 = vmul.f32 %v1083, 1.442695
        %v1104 = vpow.pop %v1103
        %v1105 = vmul.f32 %v1084, 1.442695
        %v1106 = vpow.pop %v1105
        %v1107 = vmul.f32 %v1085, 1.442695
        %v1108 = vpow.pop %v1107
        %v1109 = vmul.f32 %v1086, 1.442695
        %v1110 = vpow.pop %v1109
        %v1111 = vmul.f32 %v1087, 1.442695
        %v1112 = vpow.pop %v1111
        %v1113 = vmul.f32 %v1088, 1.442695
        %v1114 = vpow.pop %v1113
        %v1115 = vmul.f32 %v1089, 1.442695
        %v1116 = vpow.pop %v1115
        %v1117 = vmul.f32 %v1090, 1.442695
        %v1118 = vpow.pop %v1117
        %v1119 = vmul.f32 %v1091, 1.442695
        %v1120 = vpow.pop %v1119
        %v1121 = vmul.f32 %v1092, 1.442695
        %v1122 = vpow.pop %v1121
        %v1123 = vmul.f32 %v1093, 1.442695
        %v1124 = vpow.pop %v1123
        %v1125 = vmul.f32 %v1094, 1.442695
        %v1126 = vpow.pop %v1125
        %v1127 = vadd.f32 %v1096, %v1098
        %v1128 = vadd.f32 %v1127, %v1100
        %v1129 = vadd.f32 %v1128, %v1102
        %v1130 = vadd.f32 %v1129, %v1104
        %v1131 = vadd.f32 %v1130, %v1106
        %v1132 = vadd.f32 %v1131, %v1108
        %v1133 = vadd.f32 %v1132, %v1110
        %v1134 = vadd.f32 %v1133, %v1112
        %v1135 = vadd.f32 %v1134, %v1114
        %v1136 = vadd.f32 %v1135, %v1116
        %v1137 = vadd.f32 %v1136, %v1118
        %v1138 = vadd.f32 %v1137, %v1120
        %v1139 = vadd.f32 %v1138, %v1122
        %v1140 = vadd.f32 %v1139, %v1124
        %v1141 = vadd.f32 %v1140, %v1126
        %v1142 = vrot.slane %v1141, 4
        %v1143 = vadd.f32 %v1141, %v1142
        %v1144 = vrot.slane %v1143, 2
        %v1145 = vadd.f32 %v1143, %v1144
        %v1146 = vrot.slane %v1145, 1
        %v1147 = vadd.f32 %v1145, %v1146
        %v1148 = vrcp.pop %v1147
        %v1149 = vmul.f32 %v1096, %v1148
        %v1150 = vmul.f32 %v1098, %v1148
        %v1151 = vmul.f32 %v1100, %v1148
        %v1152 = vmul.f32 %v1102, %v1148
        %v1153 = vmul.f32 %v1104, %v1148
        %v1154 = vmul.f32 %v1106, %v1148
        %v1155 = vmul.f32 %v1108, %v1148
        %v1156 = vmul.f32 %v1110, %v1148
        %v1157 = vmul.f32 %v1112, %v1148
        %v1158 = vmul.f32 %v1114, %v1148
        %v1159 = vmul.f32 %v1116, %v1148
        %v1160 = vmul.f32 %v1118, %v1148
        %v1161 = vmul.f32 %v1120, %v1148
        %v1162 = vmul.f32 %v1122, %v1148
        %v1163 = vmul.f32 %v1124, %v1148
        %v1164 = vmul.f32 %v1126, %v1148
        %v1165 = vmul.f32 %v667, %v1149
        %v1166 = vmul.f32 %v667, %v1150
        %v1167 = vmul.f32 %v667, %v1151
        %v1168 = vmul.f32 %v667, %v1152
        %v1169 = vmul.f32 %v667, %v1153
        %v1170 = vmul.f32 %v667, %v1154
        %v1171 = vmul.f32 %v667, %v1155
        %v1172 = vmul.f32 %v667, %v1156
        %v1173 = vmul.f32 %v667, %v1157
        %v1174 = vmul.f32 %v667, %v1158
        %v1175 = vmul.f32 %v667, %v1159
        %v1176 = vmul.f32 %v667, %v1160
        %v1177 = vmul.f32 %v667, %v1161
        %v1178 = vmul.f32 %v667, %v1162
        %v1179 = vmul.f32 %v667, %v1163
        %v1180 = vmul.f32 %v667, %v1164
        %v1181 = vpack.c.bf16 %v1166, %v1165
        %v1182 = vpack.c.bf16 %v1168, %v1167
        %v1183 = vpack.c.bf16 %v1170, %v1169
        %v1184 = vpack.c.bf16 %v1172, %v1171
        %v1185 = vpack.c.bf16 %v1174, %v1173
        %v1186 = vpack.c.bf16 %v1176, %v1175
        %v1187 = vpack.c.bf16 %v1178, %v1177
        %v1188 = vpack.c.bf16 %v1180, %v1179
        %v1189 = vld [vmem:[%s836] sm:$0xff]
        %v1190 = vld [vmem:[%s836 + $0x8] sm:$0xff]
        %v1191 = vpack.c.bf16 %v1190, %v1189
        %1192 = vmatprep.subr.bf16.mxu0 0
        %1193 = vmatpush1.bf16.msra.mxu0 %v733
        %1194 = vmatprep.subr.bf16.mxu0 0
        %1195 = vmatpush1.bf16.msra.mxu0 %v734
        %1196 = vmatprep.subr.bf16.mxu0 0
        %1197 = vmatpush1.bf16.msra.mxu0 %v735
        %1198 = vmatprep.subr.bf16.mxu0 0
        %1199 = vmatpush1.bf16.msra.mxu0 %v736
        %1200 = vmatprep.subr.bf16.mxu0 0
        %1201 = vmatpush1.bf16.msra.mxu0 %v737
        %1202 = vmatprep.subr.bf16.mxu0 0
        %1203 = vmatpush1.bf16.msra.mxu0 %v738
        %1204 = vmatprep.subr.bf16.mxu0 0
        %1205 = vmatpush1.bf16.msra.mxu0 %v739
        %1206 = vmatprep.subr.bf16.mxu0 0
        %1207 = vmatpush1.bf16.msra.mxu0 %v740
        %1208 = vmatprep.subr.bf16.mxu0 0
        %1209 = vmatpush1.bf16.msra.mxu0 0
        %1210 = vmatprep.subr.bf16.mxu0 0
        %1211 = vmatpush1.bf16.msra.mxu0 0
        %1212 = vmatprep.subr.bf16.mxu0 0
        %1213 = vmatpush1.bf16.msra.mxu0 0
        %1214 = vmatprep.subr.bf16.mxu0 0
        %1215 = vmatpush1.bf16.msra.mxu0 0
        %1216 = vmatprep.subr.bf16.mxu0 0
        %1217 = vmatpush1.bf16.msra.mxu0 0
        %1218 = vmatprep.subr.bf16.mxu0 0
        %1219 = vmatpush1.bf16.msra.mxu0 0
        %1220 = vmatprep.subr.bf16.mxu0 0
        %1221 = vmatpush1.bf16.msra.mxu0 0
        %1222 = vmatprep.subr.bf16.mxu0 0
        %1223 = vmatpush1.bf16.msra.mxu0 0
        %1224 = vmatprep.mubr.bf16.mxu0 0
        %1225 = vmatmul.mubr.bf16.gmra.mrb[0].mxu0 %v1191
        %v1226 = vpop.f32.mrb[0].mxu0
        %v1227 = vadd.f32 %v699, %v1226
        %v1228 = vpop.f32.mrb[0].mxu0
        %v1229 = vpop.f32.mrb[0].mxu0
        %v1230 = vadd.f32 %v699, %v1229
        %v1231 = vpop.f32.mrb[0].mxu0
        %1232 = vdwg.mxu0
        %v1233 = vpack.c.bf16 %v1230, %v1227
        %1234 = vmatprep.subr.bf16.mxu0 0
        %1235 = vmatpush1.bf16.msra.mxu0 %v1181
        %1236 = vmatprep.subr.bf16.mxu0 0
        %1237 = vmatpush1.bf16.msra.mxu0 %v1182
        %1238 = vmatprep.subr.bf16.mxu0 0
        %1239 = vmatpush1.bf16.msra.mxu0 %v1183
        %1240 = vmatprep.subr.bf16.mxu0 0
        %1241 = vmatpush1.bf16.msra.mxu0 %v1184
        %1242 = vmatprep.subr.bf16.mxu0 0
        %1243 = vmatpush1.bf16.msra.mxu0 %v1185
        %1244 = vmatprep.subr.bf16.mxu0 0
        %1245 = vmatpush1.bf16.msra.mxu0 %v1186
        %1246 = vmatprep.subr.bf16.mxu0 0
        %1247 = vmatpush1.bf16.msra.mxu0 %v1187
        %1248 = vmatprep.subr.bf16.mxu0 0
        %1249 = vmatpush1.bf16.msra.mxu0 %v1188
        %1250 = vmatprep.subr.bf16.mxu0 0
        %1251 = vmatpush1.bf16.msra.mxu0 0
        %1252 = vmatprep.subr.bf16.mxu0 0
        %1253 = vmatpush1.bf16.msra.mxu0 0
        %1254 = vmatprep.subr.bf16.mxu0 0
        %1255 = vmatpush1.bf16.msra.mxu0 0
        %1256 = vmatprep.subr.bf16.mxu0 0
        %1257 = vmatpush1.bf16.msra.mxu0 0
        %1258 = vmatprep.subr.bf16.mxu0 0
        %1259 = vmatpush1.bf16.msra.mxu0 0
        %1260 = vmatprep.subr.bf16.mxu0 0
        %1261 = vmatpush1.bf16.msra.mxu0 0
        %1262 = vmatprep.subr.bf16.mxu0 0
        %1263 = vmatpush1.bf16.msra.mxu0 0
        %1264 = vmatprep.subr.bf16.mxu0 0
        %1265 = vmatpush1.bf16.msra.mxu0 0
        %1266 = vmatprep.mubr.bf16.mxu0 0
        %1267 = vmatmul.mubr.bf16.gmra.mrb[0].mxu0 %v1233
        %v1268 = vpop.f32.mrb[0].mxu0
        %v1269 = vadd.f32 0.0, %v1268
        %v1270 = vpop.f32.mrb[0].mxu0
        %v1271 = vpop.f32.mrb[0].mxu0
        %v1272 = vadd.f32 0.0, %v1271
        %v1273 = vpop.f32.mrb[0].mxu0
        %1274 = vdwg.mxu0
        %v1275 = vadd.f32 %v1189, %v1269
        %v1276 = vadd.f32 %v1190, %v1272
        %s1277 = scalar_lea.vmem %s206, 16 [#allocation10]
        %1278 = vst [vmem:[%s1277] sm:$0xff] %v1275
        %1279 = vst [vmem:[%s1277 + $0x8] sm:$0xff] %v1276
        %s1280 = sand.u32 %s99, 1
        %s1281 = scalar_lea.sflag [#allocation7], %s1280
        %s1282 = sand.u32 %s99, 1
        %s1283 = smul.addr %s1282, 32
        %s1284 = scalar_lea.vmem [#allocation10], %s1283
        // Predicated region
        $region41: #{tpu_custom_call.1} parent=31 // pred_check
          %p1285 = pneg %p109
        $region42: #{tpu_custom_call.1} parent=31 // pred_check_branch
          %1287 = sbr.rel (%p1285) target = $region44
        $region43: #{tpu_custom_call.1} parent=31 // pred_region
          %s1288 = smul.u32 2, %s23
          %s1290 = ssub.s32 512, 512
          %1291 = vsyncadd %s1281, %s1290
          %s1292 = smul.addr %s1288, 2
          %s1293 = smul.addr %s1292, 128
          %s1294 = scalar_lea.hbm %s4, %s1293
          %s1295 = sshll.u32 %s1284, 4
          %s1296 = int_to_ptr.vmem [resolvable:$true] %s1295
          %1301 = dma.vmem_to_hbm [thread:$0]  %s1296, 512, %s1294, %s1281, 128, 128, 8
        $region44: #{tpu_custom_call.1} parent=31 // pred_fallthru
          _
      $region32: #{tpu_custom_call.1} parent=5 // pred_fallthru
        _
      %p1302 = scmp.le.s32.totalorder 2, %s18
      // Predicated region
      $region45: #{tpu_custom_call.1} parent=5 // pred_check
        %p1303 = pneg %p1302
      $region46: #{tpu_custom_call.1} parent=5 // pred_check_branch
        %1305 = sbr.rel (%p1303) target = $region48
      $region47: #{tpu_custom_call.1} parent=5 // pred_region
        %s1306 = ssub.s32 %s18, 2
        // Predicated region
        $region49: #{tpu_custom_call.1} parent=47 // pred_check
          %p1307 = pneg %p115
        $region50: #{tpu_custom_call.1} parent=47 // pred_check_branch
          %1309 = sbr.rel (%p1307) target = $region52
        $region51: #{tpu_custom_call.1} parent=47 // pred_region
          %s1310 = sand.u32 %s100, 1
          %s1311 = scalar_lea.sflag [#allocation7], %s1310
          %s1312 = sand.u32 %s100, 1
          %s1313 = smul.addr %s1312, 32
          %s1314 = scalar_lea.vmem [#allocation10], %s1313
          %1315 = dma.done %s1311, 512
        $region52: #{tpu_custom_call.1} parent=47 // pred_fallthru
          _
      $region48: #{tpu_custom_call.1} parent=5 // pred_fallthru
        _
    $region6: #{tpu_custom_call.1} parent=1 // loop_footer
      %s22 = sadd.s32 1, %s18
    $region7: #{tpu_custom_call.1} parent=1 // loop_footer_branch
      %17 = sbr.rel target = $region3
    $region8: #{tpu_custom_call.1} parent=1 // loop_exit
      _
    %1316 = vsyncpa [#allocation6], 1
    %s1317 = scalar_lea.sflag [#allocation6], 1
    %1318 = vsyncpa %s1317, 1
    %1319 = vsyncpa [#allocation9], 1
    %1320 = vsyncpa [#allocation7], 1
    %s1321 = scalar_lea.sflag [#allocation7], 1
    %1322 = vsyncpa %s1321, 1

// kernel: tpu_custom_call.1
$region0: #{tpu_custom_call.1}
  #allocation0 [shape = 'u32[]', space=smem, size = 0x4, offset = 0x4, fixed_abs, tag = 'smem constant byte address 0x4 - core index']
  #allocation1 [shape = 'u32[144,128]{1,0:T(1,128)}', space=vmem, size = 0x12000, scoped, tag = 'internal scratch']
  #allocation2 [shape = 'f32[128,128]{1,0:T(8,128)}', space=vmem, size = 0x10000, scoped, tag = 'scratch operand']
  #allocation3 [shape = 's32[1]{0}', space=sflag, size = 0x4, scoped, tag = 'scoped memory for tpu_custom_call.1']
  #allocation4 [shape = 'f32[1]{0:T(128)S(6)}', space=smem, size = 0x200, scoped, tag = 'prefetched SMEM operand 0']
  %s0 = inlined_call_operand.<no memory space> [shape: f32[1], index: 0, kind: input, shape index: {}]
  %s1 = inlined_call_operand.hbm [shape: f32[4,16,128], index: 1, kind: input, shape index: {}]
  %s2 = inlined_call_operand.hbm [shape: bf16[128,384], index: 2, kind: input, shape index: {}]
  %s3 = inlined_call_operand.vmem [shape: f32[1,384], index: 3, kind: input, shape index: {}]
  %s4 = inlined_call_operand.hbm [shape: f32[4,16,128], index: 4, kind: output, shape index: {}]
  %s5 = sld [smem:[#allocation0]]
  $region53: #{tpu_custom_call.1} parent=0
    _
  %s7 = ssub.s32 1, %s5
  %s8 = scalar_select 0, %s7, %s5
  %9 = sst [smem:[#allocation4]] %s0
  $region1: #{tpu_custom_call.1} parent=0
    #allocation5 [shape = 'u8[32768]{0}', space=vmem, size = 0x8000, scoped, tag = 'input window, operand 1']
    #allocation6 [shape = 's32[2]{0}', space=sflag, size = 0x8, scoped, tag = 'scoped memory for tpu_custom_call.1']
    #allocation7 [shape = 's32[2]{0}', space=sflag, size = 0x8, scoped, tag = 'scoped memory for tpu_custom_call.1']
    #allocation8 [shape = 'u8[98304]{0}', space=vmem, size = 0x18000, scoped, tag = 'input window, operand 2, single buffered']
    #allocation9 [shape = 's32[1]{0}', space=sflag, size = 0x4, scoped, tag = 'scoped memory for tpu_custom_call.1']
    #allocation10 [shape = 'u8[32768]{0}', space=vmem, size = 0x8000, scoped, tag = 'output window, operand 0']
    %10 = vsyncpa [#allocation6], 0
    %s11 = scalar_lea.sflag [#allocation6], 1
    %12 = vsyncpa %s11, 0
    %13 = vsyncpa [#allocation9], 0
    %14 = vsyncpa [#allocation7], 0
    %s15 = scalar_lea.sflag [#allocation7], 1
    %16 = vsyncpa %s15, 0
    loop: start=0, step=1, limit=4
    $region2: #{tpu_custom_call.1} parent=1 // loop_pre_header
      _
    $region3: #{tpu_custom_call.1} parent=1 // loop_header
      %s18 = sphi 0, %s22
      %p19 = scmp.ge.s32.totalorder %s18, 4
      %s28 = sphi 0, %s30
      %s31 = sphi 0, %s28
      %s32 = sphi 0, %s31
      %s48 = sphi 0, %s32
      %s52 = sphi 0, %s52
      %s54 = sphi 0, %s52
      %s55 = sphi 0, %s54
      %s69 = sphi 0, %s55
      %s73 = sphi 0, %s73
      %s75 = sphi 0, %s73
      %s76 = sphi 0, %s75
      %s90 = sphi 0, %s76
      %s96 = sphi 0, %s98
      %s99 = sphi 0, %s96
      %s100 = sphi 0, %s99
      %s116 = sphi 0, %s100
    $region4: #{tpu_custom_call.1} parent=1 // loop_header_branch
      %21 = sbr.rel (%p19) target = $region8
    $region5: #{tpu_custom_call.1} parent=1 // loop_body
      %s23 = ssub.s32 %s18, 1
      %s24 = ssub.s32 %s18, 2
      %s25 = sadd.s32 %s18, 1
      %s26 = ssub.s32 %s18, %s25
      %p27 = scmp.eq.s32.totalorder %s26, 0
      %s29 = sadd.s32 %s28, 1
      %s30 = scalar_select %p27, %s28, %s29
      %p33 = pneg %p27
      %p34 = scmp.eq.s32.totalorder %s18, 1
      %p35 = por %p33, %p34
      %p36 = scmp.ne.s32.totalorder %s28, %s31
      %p37 = scmp.eq.s32.totalorder %s18, 0
      %p38 = por %p36, %p37
      %p39 = scmp.ne.s32.totalorder %s28, %s31
      %p40 = scmp.eq.s32.totalorder %s23, 1
      %p41 = por %p39, %p40
      %p42 = scmp.ne.s32.totalorder %s31, %s32
      %p43 = scmp.eq.s32.totalorder %s23, 0
      %p44 = por %p42, %p43
      %p45 = scmp.ne.s32.totalorder %s31, %s32
      %p46 = scmp.eq.s32.totalorder %s24, 1
      %p47 = por %p45, %p46
      %p49 = scmp.ne.s32.totalorder %s32, %s48
      %p50 = scmp.eq.s32.totalorder %s24, 0
      %p51 = por %p49, %p50
      %s53 = sadd.s32 %s52, 1
      %p56 = scmp.eq.s32.totalorder %s18, 1
      %p57 = scmp.ne.s32.totalorder %s52, %s54
      %p58 = scmp.eq.s32.totalorder %s18, 0
      %p59 = por %p57, %p58
      %p60 = scmp.ne.s32.totalorder %s52, %s54
      %p61 = scmp.eq.s32.totalorder %s23, 1
      %p62 = por %p60, %p61
      %p63 = scmp.ne.s32.totalorder %s54, %s55
      %p64 = scmp.eq.s32.totalorder %s23, 0
      %p65 = por %p63, %p64
      %p66 = scmp.ne.s32.totalorder %s54, %s55
      %p67 = scmp.eq.s32.totalorder %s24, 1
      %p68 = por %p66, %p67
      %p70 = scmp.ne.s32.totalorder %s55, %s69
      %p71 = scmp.eq.s32.totalorder %s24, 0
      %p72 = por %p70, %p71
      %s74 = sadd.s32 %s73, 1
      %p77 = scmp.eq.s32.totalorder %s18, 1
      %p78 = scmp.ne.s32.totalorder %s73, %s75
      %p79 = scmp.eq.s32.totalorder %s18, 0
      %p80 = por %p78, %p79
      %p81 = scmp.ne.s32.totalorder %s73, %s75
      %p82 = scmp.eq.s32.totalorder %s23, 1
      %p83 = por %p81, %p82
      %p84 = scmp.ne.s32.totalorder %s75, %s76
      %p85 = scmp.eq.s32.totalorder %s23, 0
      %p86 = por %p84, %p85
      %p87 = scmp.ne.s32.totalorder %s75, %s76
      %p88 = scmp.eq.s32.totalorder %s24, 1
      %p89 = por %p87, %p88
      %p91 = scmp.ne.s32.totalorder %s76, %s90
      %p92 = scmp.eq.s32.totalorder %s24, 0
      %p93 = por %p91, %p92
      %s94 = ssub.s32 %s18, %s25
      %p95 = scmp.eq.s32.totalorder %s94, 0
      %s97 = sadd.s32 %s96, 1
      %s98 = scalar_select %p95, %s96, %s97
      %p101 = pneg %p95
      %p102 = scmp.eq.s32.totalorder %s18, 1
      %p103 = por %p101, %p102
      %p104 = scmp.ne.s32.totalorder %s96, %s99
      %p105 = scmp.eq.s32.totalorder %s18, 0
      %p106 = por %p104, %p105
      %p107 = scmp.ne.s32.totalorder %s96, %s99
      %p108 = scmp.eq.s32.totalorder %s23, 1
      %p109 = por %p107, %p108
      %p110 = scmp.ne.s32.totalorder %s99, %s100
      %p111 = scmp.eq.s32.totalorder %s23, 0
      %p112 = por %p110, %p111
      %p113 = scmp.ne.s32.totalorder %s99, %s100
      %p114 = scmp.eq.s32.totalorder %s24, 1
      %p115 = por %p113, %p114
      %p117 = scmp.ne.s32.totalorder %s100, %s116
      %p118 = scmp.eq.s32.totalorder %s24, 0
      %p119 = por %p117, %p118
      %p120 = scmp.le.s32.totalorder 1, %s18
      %p121 = scmp.lt.s32.totalorder %s18, 3
      %p122 = pnand %p120, %p121
      %p123 = pneg %p122
      // Predicated region
      $region9: #{tpu_custom_call.1} parent=5 // pred_check
        _
      $region10: #{tpu_custom_call.1} parent=5 // pred_check_branch
        %125 = sbr.rel (%p122) target = $region12
      $region11: #{tpu_custom_call.1} parent=5 // pred_region
        %s126 = ssub.s32 %s18, 1
        // Predicated region
        $region13: #{tpu_custom_call.1} parent=11 // pred_check
          %p127 = pneg %p65
        $region14: #{tpu_custom_call.1} parent=11 // pred_check_branch
          %129 = sbr.rel (%p127) target = $region16
        $region15: #{tpu_custom_call.1} parent=11 // pred_region
          %s131 = ssub.s32 3072, 3072
          %132 = vsyncadd [#allocation9], %s131
          %s133 = sshll.u32 [#allocation8], 4
          %s134 = int_to_ptr.vmem [resolvable:$true] %s133
          %139 = dma.hbm_to_vmem [thread:$0]  %s2, 3072, %s134, [#allocation9], 192, 192, 12
        $region16: #{tpu_custom_call.1} parent=11 // pred_fallthru
          _
        // Predicated region
        $region17: #{tpu_custom_call.1} parent=11 // pred_check
          %p140 = pneg %p86
        $region18: #{tpu_custom_call.1} parent=11 // pred_check_branch
          %142 = sbr.rel (%p140) target = $region20
        $region19: #{tpu_custom_call.1} parent=11 // pred_region
          _
        $region20: #{tpu_custom_call.1} parent=11 // pred_fallthru
          _
      $region12: #{tpu_custom_call.1} parent=5 // pred_fallthru
        _
      %p143 = scmp.lt.s32.totalorder %s18, 2
      // Predicated region
      $region21: #{tpu_custom_call.1} parent=5 // pred_check
        %p144 = pneg %p143
      $region22: #{tpu_custom_call.1} parent=5 // pred_check_branch
        %146 = sbr.rel (%p144) target = $region24
      $region23: #{tpu_custom_call.1} parent=5 // pred_region
        // Predicated region
        $region25: #{tpu_custom_call.1} parent=23 // pred_check
          %p147 = pneg %p38
        $region26: #{tpu_custom_call.1} parent=23 // pred_check_branch
          %149 = sbr.rel (%p147) target = $region28
        $region27: #{tpu_custom_call.1} parent=23 // pred_region
          %s150 = sand.u32 %s28, 1
          %s151 = scalar_lea.sflag [#allocation6], %s150
          %s152 = sand.u32 %s28, 1
          %s153 = smul.addr %s152, 32
          %s154 = scalar_lea.vmem [#allocation5], %s153
          %s155 = smul.u32 2, %s18
          %s157 = ssub.s32 512, 512
          %158 = vsyncadd %s151, %s157
          %s159 = smul.addr %s155, 2
          %s160 = smul.addr %s159, 128
          %s161 = scalar_lea.hbm %s1, %s160
          %s162 = sshll.u32 %s154, 4
          %s163 = int_to_ptr.vmem [resolvable:$true] %s162
          %168 = dma.hbm_to_vmem [thread:$0]  %s161, 512, %s163, %s151, 128, 128, 8
        $region28: #{tpu_custom_call.1} parent=23 // pred_fallthru
          _
      $region24: #{tpu_custom_call.1} parent=5 // pred_fallthru
        _
      %p169 = scmp.le.s32.totalorder 1, %s18
      %p170 = scmp.lt.s32.totalorder %s18, 3
      %p171 = pnand %p169, %p170
      %p172 = pneg %p171
      // Predicated region
      $region29: #{tpu_custom_call.1} parent=5 // pred_check
        _
      $region30: #{tpu_custom_call.1} parent=5 // pred_check_branch
        %174 = sbr.rel (%p171) target = $region32
      $region31: #{tpu_custom_call.1} parent=5 // pred_region
        %s175 = ssub.s32 %s18, 1
        %s176 = sand.u32 %s31, 1
        %s177 = scalar_lea.sflag [#allocation6], %s176
        %s178 = sand.u32 %s31, 1
        %s179 = smul.addr %s178, 32
        %s180 = scalar_lea.vmem [#allocation5], %s179
        // Predicated region
        $region33: #{tpu_custom_call.1} parent=31 // pred_check
          %p181 = pneg %p44
        $region34: #{tpu_custom_call.1} parent=31 // pred_check_branch
          %183 = sbr.rel (%p181) target = $region36
        $region35: #{tpu_custom_call.1} parent=31 // pred_region
          %184 = dma.done %s177, 512
        $region36: #{tpu_custom_call.1} parent=31 // pred_fallthru
          _
        // Predicated region
        $region37: #{tpu_custom_call.1} parent=31 // pred_check
          %p185 = pneg %p65
        $region38: #{tpu_custom_call.1} parent=31 // pred_check_branch
          %187 = sbr.rel (%p185) target = $region40
        $region39: #{tpu_custom_call.1} parent=31 // pred_region
          %188 = dma.done [#allocation9], 3072
        $region40: #{tpu_custom_call.1} parent=31 // pred_fallthru
          _
        %s189 = sand.u32 %s31, 1
        %s190 = scalar_lea.sflag [#allocation6], %s189
        %s191 = sand.u32 %s31, 1
        %s192 = smul.addr %s191, 32
        %s193 = scalar_lea.vmem [#allocation5], %s192
        %p194 = pneg %p44
        %p195 = pneg %p41
        %p196 = pneg %p65
        %p197 = pneg %p62
        %p198 = pneg %p86
        %p199 = pneg %p83
        %p200 = pneg %p112
        %p201 = pneg %p109
        %s202 = sand.u32 %s99, 1
        %s203 = scalar_lea.sflag [#allocation7], %s202
        %s204 = sand.u32 %s99, 1
        %s205 = smul.addr %s204, 32
        %s206 = scalar_lea.vmem [#allocation10], %s205
        %s207 = smul.u32 2, %s23
        %s208 = smul.u32 2, %s23
        %s210 = sld [smem:[#allocation4]]
        %v211 = vld [vmem:[#allocation8] sm:$0xff]
        %v212 = vld [vmem:[#allocation8 + $0xc] sm:$0xff]
        %v213 = vld [vmem:[#allocation8 + $0x18] sm:$0xff]
        %v214 = vld [vmem:[#allocation8 + $0x24] sm:$0xff]
        %v215 = vld [vmem:[#allocation8 + $0x30] sm:$0xff]
        %v216 = vld [vmem:[#allocation8 + $0x3c] sm:$0xff]
        %v217 = vld [vmem:[#allocation8 + $0x48] sm:$0xff]
        %v218 = vld [vmem:[#allocation8 + $0x54] sm:$0xff]
        %v219 = vld [vmem:[#allocation8 + $0x60] sm:$0xff]
        %v220 = vld [vmem:[#allocation8 + $0x6c] sm:$0xff]
        %v221 = vld [vmem:[#allocation8 + $0x78] sm:$0xff]
        %v222 = vld [vmem:[#allocation8 + $0x84] sm:$0xff]
        %v223 = vld [vmem:[#allocation8 + $0x90] sm:$0xff]
        %v224 = vld [vmem:[#allocation8 + $0x9c] sm:$0xff]
        %v225 = vld [vmem:[#allocation8 + $0xa8] sm:$0xff]
        %v226 = vld [vmem:[#allocation8 + $0xb4] sm:$0xff]
        %v227 = vld [vmem:[#allocation8 + $0x8] sm:$0xf]
        %v228 = vld [vmem:[#allocation8 + $0x14] sm:$0xf]
        %v229 = vld [vmem:[#allocation8 + $0x20] sm:$0xf]
        %v230 = vld [vmem:[#allocation8 + $0x2c] sm:$0xf]
        %v231 = vld [vmem:[#allocation8 + $0x38] sm:$0xf]
        %v232 = vld [vmem:[#allocation8 + $0x44] sm:$0xf]
        %v233 = vld [vmem:[#allocation8 + $0x50] sm:$0xf]
        %v234 = vld [vmem:[#allocation8 + $0x5c] sm:$0xf]
        %v235 = vld [vmem:[#allocation8 + $0x68] sm:$0xf]
        %v236 = vld [vmem:[#allocation8 + $0x74] sm:$0xf]
        %v237 = vld [vmem:[#allocation8 + $0x80] sm:$0xf]
        %v238 = vld [vmem:[#allocation8 + $0x8c] sm:$0xf]
        %v239 = vld [vmem:[#allocation8 + $0x98] sm:$0xf]
        %v240 = vld [vmem:[#allocation8 + $0xa4] sm:$0xf]
        %v241 = vld [vmem:[#allocation8 + $0xb0] sm:$0xf]
        %v242 = vld [vmem:[#allocation8 + $0xbc] sm:$0xf]
        %v243 = vld [vmem:[%s3] sm:$0x1]
        %v244 = vld [vmem:[%s3 + $0x1] sm:$0x1]
        %v245 = vld [vmem:[%s3 + $0x2] sm:$0x1]
        %v246 = vld [vmem:[%s180] sm:$0xff]
        %v247 = vld [vmem:[%s180 + $0x8] sm:$0xff]
        %v248 = vpack.c.bf16 %v247, %v246
        %v265 = vunpack.c.l.b16 %v211
        %v266 = vunpack.c.h.b16 %v211
        %v267 = vunpack.c.l.b16 %v212
        %v268 = vunpack.c.h.b16 %v212
        %v269 = vunpack.c.l.b16 %v213
        %v270 = vunpack.c.h.b16 %v213
        %v271 = vunpack.c.l.b16 %v214
        %v272 = vunpack.c.h.b16 %v214
        %v273 = vunpack.c.l.b16 %v215
        %v274 = vunpack.c.h.b16 %v215
        %v275 = vunpack.c.l.b16 %v216
        %v276 = vunpack.c.h.b16 %v216
        %v277 = vunpack.c.l.b16 %v217
        %v278 = vunpack.c.h.b16 %v217
        %v279 = vunpack.c.l.b16 %v218
        %v280 = vunpack.c.h.b16 %v218
        %v281 = vunpack.c.l.b16 %v219
        %v282 = vunpack.c.h.b16 %v219
        %v283 = vunpack.c.l.b16 %v220
        %v284 = vunpack.c.h.b16 %v220
        %v285 = vunpack.c.l.b16 %v221
        %v286 = vunpack.c.h.b16 %v221
        %v287 = vunpack.c.l.b16 %v222
        %v288 = vunpack.c.h.b16 %v222
        %v289 = vunpack.c.l.b16 %v223
        %v290 = vunpack.c.h.b16 %v223
        %v291 = vunpack.c.l.b16 %v224
        %v292 = vunpack.c.h.b16 %v224
        %v293 = vunpack.c.l.b16 %v225
        %v294 = vunpack.c.h.b16 %v225
        %v295 = vunpack.c.l.b16 %v226
        %v296 = vunpack.c.h.b16 %v226
        %v297 = vpack.c.b16 %v267, %v265
        %v298 = vpack.c.b16 %v268, %v266
        %v299 = vpack.c.b16 %v271, %v269
        %v300 = vpack.c.b16 %v272, %v270
        %v301 = vpack.c.b16 %v275, %v273
        %v302 = vpack.c.b16 %v276, %v274
        %v303 = vpack.c.b16 %v279, %v277
        %v304 = vpack.c.b16 %v280, %v278
        %v305 = vpack.c.b16 %v283, %v281
        %v306 = vpack.c.b16 %v284, %v282
        %v307 = vpack.c.b16 %v287, %v285
        %v308 = vpack.c.b16 %v288, %v286
        %v309 = vpack.c.b16 %v291, %v289
        %v310 = vpack.c.b16 %v292, %v290
        %v311 = vpack.c.b16 %v295, %v293
        %v312 = vpack.c.b16 %v296, %v294
        %329 = vmatprep.subr.bf16.mxu0 %v298
        %330 = vmatpush1.bf16.msra.mxu0 %v297
        %331 = vmatprep.subr.bf16.mxu0 %v300
        %332 = vmatpush1.bf16.msra.mxu0 %v299
        %333 = vmatprep.subr.bf16.mxu0 %v302
        %334 = vmatpush1.bf16.msra.mxu0 %v301
        %335 = vmatprep.subr.bf16.mxu0 %v304
        %336 = vmatpush1.bf16.msra.mxu0 %v303
        %337 = vmatprep.subr.bf16.mxu0 %v306
        %338 = vmatpush1.bf16.msra.mxu0 %v305
        %339 = vmatprep.subr.bf16.mxu0 %v308
        %340 = vmatpush1.bf16.msra.mxu0 %v307
        %341 = vmatprep.subr.bf16.mxu0 %v310
        %342 = vmatpush1.bf16.msra.mxu0 %v309
        %343 = vmatprep.subr.bf16.mxu0 %v312
        %344 = vmatpush1.bf16.msra.mxu0 %v311
        %345 = vmatprep.subr.bf16.mxu0 0
        %346 = vmatpush1.bf16.msra.mxu0 0
        %347 = vmatprep.subr.bf16.mxu0 0
        %348 = vmatpush1.bf16.msra.mxu0 0
        %349 = vmatprep.subr.bf16.mxu0 0
        %350 = vmatpush1.bf16.msra.mxu0 0
        %351 = vmatprep.subr.bf16.mxu0 0
        %352 = vmatpush1.bf16.msra.mxu0 0
        %353 = vmatprep.subr.bf16.mxu0 0
        %354 = vmatpush1.bf16.msra.mxu0 0
        %355 = vmatprep.subr.bf16.mxu0 0
        %356 = vmatpush1.bf16.msra.mxu0 0
        %357 = vmatprep.subr.bf16.mxu0 0
        %358 = vmatpush1.bf16.msra.mxu0 0
        %359 = vmatprep.subr.bf16.mxu0 0
        %360 = vmatpush1.bf16.msra.mxu0 0
        %361 = vmatprep.mubr.bf16.mxu0 0
        %362 = vmatmul.mubr.bf16.gmra.mrb[0].mxu0 %v248
        %v363 = vpop.f32.mrb[0].mxu0
        %v364 = vadd.f32 0.0, %v363
        %v365 = vpop.f32.mrb[0].mxu0
        %v366 = vadd.f32 0.0, %v365
        %v367 = vpop.f32.mrb[0].mxu0
        %v368 = vadd.f32 0.0, %v367
        %v369 = vpop.f32.mrb[0].mxu0
        %v370 = vadd.f32 0.0, %v369
        %371 = vdwg.mxu0
        %v373 = vlaneseq
        %v374 = vshrl.u32 %v373, 7
        %v375 = vsub.s32 0, %v374
        %v376 = vrot.slane %v243, %v375
        %v378 = vadd.f32 %v364, %v376
        %v379 = vadd.f32 %v368, %v376
        %v380 = vpack.c.bf16 %v379, %v378
        %v382 = vlaneseq
        %v383 = vshrl.u32 %v382, 7
        %v384 = vsub.s32 0, %v383
        %v385 = vrot.slane %v244, %v384
        %v387 = vadd.f32 %v366, %v385
        %v388 = vadd.f32 %v370, %v385
        %v389 = vpack.c.bf16 %v388, %v387
        %390 = vxpose.xlu0.c.b16.start [1/8] %v380, 128
        %391 = vxpose.xlu0.c.b16.cont [2/8] 0, 128
        %392 = vxpose.xlu0.c.b16.cont [3/8] 0, 128
        %393 = vxpose.xlu0.c.b16.cont [4/8] 0, 128
        %394 = vxpose.xlu0.c.b16.cont [5/8] 0, 128
        %395 = vxpose.xlu0.c.b16.cont [6/8] 0, 128
        %396 = vxpose.xlu0.c.b16.cont [7/8] 0, 128
        %397 = vxpose.xlu0.c.b16.end [8/8] 0, 128
        %v398 = vpop.trf.xlu0
        %v399 = vpop.trf.xlu0
        %v400 = vpop.trf.xlu0
        %v401 = vpop.trf.xlu0
        %v402 = vpop.trf.xlu0
        %v403 = vpop.trf.xlu0
        %v404 = vpop.trf.xlu0
        %v405 = vpop.trf.xlu0
        %vm406 = vcmask 130048
        %v408 = vsel %vm406, %v398, 0
        %v411 = vsel %vm406, %v399, 0
        %v414 = vsel %vm406, %v400, 0
        %v417 = vsel %vm406, %v401, 0
        %v420 = vsel %vm406, %v402, 0
        %v423 = vsel %vm406, %v403, 0
        %v426 = vsel %vm406, %v404, 0
        %v429 = vsel %vm406, %v405, 0
        %431 = vmatprep.subr.bf16.mxu0 0
        %432 = vmatpush1.bf16.msra.mxu0 %v389
        %433 = vmatprep.subr.bf16.mxu0 0
        %434 = vmatpush1.bf16.msra.mxu0 0
        %435 = vmatprep.subr.bf16.mxu0 0
        %436 = vmatpush1.bf16.msra.mxu0 0
        %437 = vmatprep.subr.bf16.mxu0 0
        %438 = vmatpush1.bf16.msra.mxu0 0
        %439 = vmatprep.subr.bf16.mxu0 0
        %440 = vmatpush1.bf16.msra.mxu0 0
        %441 = vmatprep.subr.bf16.mxu0 0
        %442 = vmatpush1.bf16.msra.mxu0 0
        %443 = vmatprep.subr.bf16.mxu0 0
        %444 = vmatpush1.bf16.msra.mxu0 0
        %445 = vmatprep.subr.bf16.mxu0 0
        %446 = vmatpush1.bf16.msra.mxu0 0
        %447 = vmatprep.subr.bf16.mxu0 0
        %448 = vmatpush1.bf16.msra.mxu0 0
        %449 = vmatprep.subr.bf16.mxu0 0
        %450 = vmatpush1.bf16.msra.mxu0 0
        %451 = vmatprep.subr.bf16.mxu0 0
        %452 = vmatpush1.bf16.msra.mxu0 0
        %453 = vmatprep.subr.bf16.mxu0 0
        %454 = vmatpush1.bf16.msra.mxu0 0
        %455 = vmatprep.subr.bf16.mxu0 0
        %456 = vmatpush1.bf16.msra.mxu0 0
        %457 = vmatprep.subr.bf16.mxu0 0
        %458 = vmatpush1.bf16.msra.mxu0 0
        %459 = vmatprep.subr.bf16.mxu0 0
        %460 = vmatpush1.bf16.msra.mxu0 0
        %461 = vmatprep.subr.bf16.mxu0 0
        %462 = vmatpush1.bf16.msra.mxu0 0
        %463 = vmatprep.mubr.bf16.mxu0 0
        %464 = vmatmul.mubr.bf16.gmra.mrb[0].mxu0 %v408
        %v465 = vpop.f32.mrb[0].mxu0
        %v466 = vadd.f32 0.0, %v465
        %v467 = vpop.f32.mrb[0].mxu0
        %v468 = vpop.f32.mrb[0].mxu0
        %v469 = vadd.f32 0.0, %v468
        %v470 = vpop.f32.mrb[0].mxu0
        %471 = vmatprep.mubr.bf16.mxu0 0
        %472 = vmatmul.mubr.bf16.gmra.mrb[0].mxu0 %v411
        %v473 = vpop.f32.mrb[0].mxu0
        %v474 = vadd.f32 0.0, %v473
        %v475 = vpop.f32.mrb[0].mxu0
        %v476 = vpop.f32.mrb[0].mxu0
        %v477 = vadd.f32 0.0, %v476
        %v478 = vpop.f32.mrb[0].mxu0
        %479 = vmatprep.mubr.bf16.mxu0 0
        %480 = vmatmul.mubr.bf16.gmra.mrb[0].mxu0 %v414
        %v481 = vpop.f32.mrb[0].mxu0
        %v482 = vadd.f32 0.0, %v481
        %v483 = vpop.f32.mrb[0].mxu0
        %v484 = vpop.f32.mrb[0].mxu0
        %v485 = vadd.f32 0.0, %v484
        %v486 = vpop.f32.mrb[0].mxu0
        %487 = vmatprep.mubr.bf16.mxu0 0
        %488 = vmatmul.mubr.bf16.gmra.mrb[0].mxu0 %v417
        %v489 = vpop.f32.mrb[0].mxu0
        %v490 = vadd.f32 0.0, %v489
        %v491 = vpop.f32.mrb[0].mxu0
        %v492 = vpop.f32.mrb[0].mxu0
        %v493 = vadd.f32 0.0, %v492
        %v494 = vpop.f32.mrb[0].mxu0
        %495 = vmatprep.mubr.bf16.mxu0 0
        %496 = vmatmul.mubr.bf16.gmra.mrb[0].mxu0 %v420
        %v497 = vpop.f32.mrb[0].mxu0
        %v498 = vadd.f32 0.0, %v497
        %v499 = vpop.f32.mrb[0].mxu0
        %v500 = vpop.f32.mrb[0].mxu0
        %v501 = vadd.f32 0.0, %v500
        %v502 = vpop.f32.mrb[0].mxu0
        %503 = vmatprep.mubr.bf16.mxu0 0
        %504 = vmatmul.mubr.bf16.gmra.mrb[0].mxu0 %v423
        %v505 = vpop.f32.mrb[0].mxu0
        %v506 = vadd.f32 0.0, %v505
        %v507 = vpop.f32.mrb[0].mxu0
        %v508 = vpop.f32.mrb[0].mxu0
        %v509 = vadd.f32 0.0, %v508
        %v510 = vpop.f32.mrb[0].mxu0
        %511 = vmatprep.mubr.bf16.mxu0 0
        %512 = vmatmul.mubr.bf16.gmra.mrb[0].mxu0 %v426
        %v513 = vpop.f32.mrb[0].mxu0
        %v514 = vadd.f32 0.0, %v513
        %v515 = vpop.f32.mrb[0].mxu0
        %v516 = vpop.f32.mrb[0].mxu0
        %v517 = vadd.f32 0.0, %v516
        %v518 = vpop.f32.mrb[0].mxu0
        %519 = vmatprep.mubr.bf16.mxu0 0
        %520 = vmatmul.mubr.bf16.gmra.mrb[0].mxu0 %v429
        %v521 = vpop.f32.mrb[0].mxu0
        %v522 = vadd.f32 0.0, %v521
        %v523 = vpop.f32.mrb[0].mxu0
        %v524 = vpop.f32.mrb[0].mxu0
        %v525 = vadd.f32 0.0, %v524
        %v526 = vpop.f32.mrb[0].mxu0
        %527 = vdwg.mxu0
        %528 = vst [vmem:[#allocation2] sm:$0xff] %v466
        %529 = vst [vmem:[#allocation2 + $0x8] sm:$0xff] %v469
        %530 = vst [vmem:[#allocation2 + $0x10] sm:$0xff] %v474
        %531 = vst [vmem:[#allocation2 + $0x18] sm:$0xff] %v477
        %532 = vst [vmem:[#allocation2 + $0x20] sm:$0xff] %v482
        %533 = vst [vmem:[#allocation2 + $0x28] sm:$0xff] %v485
        %534 = vst [vmem:[#allocation2 + $0x30] sm:$0xff] %v490
        %535 = vst [vmem:[#allocation2 + $0x38] sm:$0xff] %v493
        %536 = vst [vmem:[#allocation2 + $0x40] sm:$0xff] %v498
        %537 = vst [vmem:[#allocation2 + $0x48] sm:$0xff] %v501
        %538 = vst [vmem:[#allocation2 + $0x50] sm:$0xff] %v506
        %539 = vst [vmem:[#allocation2 + $0x58] sm:$0xff] %v509
        %540 = vst [vmem:[#allocation2 + $0x60] sm:$0xff] %v514
        %541 = vst [vmem:[#allocation2 + $0x68] sm:$0xff] %v517
        %542 = vst [vmem:[#allocation2 + $0x70] sm:$0xff] %v522
        %543 = vst [vmem:[#allocation2 + $0x78] sm:$0xff] %v525
        %v544 = vld [vmem:[#allocation2] sm:$0xff]
        %v545 = vld [vmem:[#allocation2 + $0x8] sm:$0xff]
        %v546 = vld [vmem:[#allocation2 + $0x10] sm:$0xff]
        %v547 = vld [vmem:[#allocation2 + $0x18] sm:$0xff]
        %v548 = vld [vmem:[#allocation2 + $0x20] sm:$0xff]
        %v549 = vld [vmem:[#allocation2 + $0x28] sm:$0xff]
        %v550 = vld [vmem:[#allocation2 + $0x30] sm:$0xff]
        %v551 = vld [vmem:[#allocation2 + $0x38] sm:$0xff]
        %v552 = vld [vmem:[#allocation2 + $0x40] sm:$0xff]
        %v553 = vld [vmem:[#allocation2 + $0x48] sm:$0xff]
        %v554 = vld [vmem:[#allocation2 + $0x50] sm:$0xff]
        %v555 = vld [vmem:[#allocation2 + $0x58] sm:$0xff]
        %v556 = vld [vmem:[#allocation2 + $0x60] sm:$0xff]
        %v557 = vld [vmem:[#allocation2 + $0x68] sm:$0xff]
        %v558 = vld [vmem:[#allocation2 + $0x70] sm:$0xff]
        %v559 = vld [vmem:[#allocation2 + $0x78] sm:$0xff]
        %v560 = vmax.f32 %v544, %v548
        %v561 = vmax.f32 %v545, %v549
        %v562 = vmax.f32 %v546, %v550
        %v563 = vmax.f32 %v547, %v551
        %v564 = vmax.f32 %v560, %v552
        %v565 = vmax.f32 %v561, %v553
        %v566 = vmax.f32 %v562, %v554
        %v567 = vmax.f32 %v563, %v555
        %v568 = vmax.f32 %v564, %v556
        %v569 = vmax.f32 %v565, %v557
        %v570 = vmax.f32 %v566, %v558
        %v571 = vmax.f32 %v567, %v559
        %v572 = vmax.f32 %v568, %v569
        %v573 = vmax.f32 %v570, %v571
        %v574 = vmax.f32 %v572, %v573
        %v575 = vrot.slane %v574, 4
        %v576 = vmax.f32 %v574, %v575
        %v577 = vrot.slane %v576, 2
        %v578 = vmax.f32 %v576, %v577
        %v579 = vrot.slane %v578, 1
        %v580 = vmax.f32 %v578, %v579
        %v581 = vsub.f32 %v544, %v580
        %v582 = vsub.f32 %v545, %v580
        %v583 = vsub.f32 %v546, %v580
        %v584 = vsub.f32 %v547, %v580
        %v585 = vsub.f32 %v548, %v580
        %v586 = vsub.f32 %v549, %v580
        %v587 = vsub.f32 %v550, %v580
        %v588 = vsub.f32 %v551, %v580
        %v589 = vsub.f32 %v552, %v580
        %v590 = vsub.f32 %v553, %v580
        %v591 = vsub.f32 %v554, %v580
        %v592 = vsub.f32 %v555, %v580
        %v593 = vsub.f32 %v556, %v580
        %v594 = vsub.f32 %v557, %v580
        %v595 = vsub.f32 %v558, %v580
        %v596 = vsub.f32 %v559, %v580
        %v597 = vmul.f32 %v581, 1.442695
        %v598 = vpow.pop %v597
        %v599 = vmul.f32 %v582, 1.442695
        %v600 = vpow.pop %v599
        %v601 = vmul.f32 %v583, 1.442695
        %v602 = vpow.pop %v601
        %v603 = vmul.f32 %v584, 1.442695
        %v604 = vpow.pop %v603
        %v605 = vmul.f32 %v585, 1.442695
        %v606 = vpow.pop %v605
        %v607 = vmul.f32 %v586, 1.442695
        %v608 = vpow.pop %v607
        %v609 = vmul.f32 %v587, 1.442695
        %v610 = vpow.pop %v609
        %v611 = vmul.f32 %v588, 1.442695
        %v612 = vpow.pop %v611
        %v613 = vmul.f32 %v589, 1.442695
        %v614 = vpow.pop %v613
        %v615 = vmul.f32 %v590, 1.442695
        %v616 = vpow.pop %v615
        %v617 = vmul.f32 %v591, 1.442695
        %v618 = vpow.pop %v617
        %v619 = vmul.f32 %v592, 1.442695
        %v620 = vpow.pop %v619
        %v621 = vmul.f32 %v593, 1.442695
        %v622 = vpow.pop %v621
        %v623 = vmul.f32 %v594, 1.442695
        %v624 = vpow.pop %v623
        %v625 = vmul.f32 %v595, 1.442695
        %v626 = vpow.pop %v625
        %v627 = vmul.f32 %v596, 1.442695
        %v628 = vpow.pop %v627
        %v629 = vadd.f32 %v598, %v600
        %v630 = vadd.f32 %v629, %v602
        %v631 = vadd.f32 %v630, %v604
        %v632 = vadd.f32 %v631, %v606
        %v633 = vadd.f32 %v632, %v608
        %v634 = vadd.f32 %v633, %v610
        %v635 = vadd.f32 %v634, %v612
        %v636 = vadd.f32 %v635, %v614
        %v637 = vadd.f32 %v636, %v616
        %v638 = vadd.f32 %v637, %v618
        %v639 = vadd.f32 %v638, %v620
        %v640 = vadd.f32 %v639, %v622
        %v641 = vadd.f32 %v640, %v624
        %v642 = vadd.f32 %v641, %v626
        %v643 = vadd.f32 %v642, %v628
        %v644 = vrot.slane %v643, 4
        %v645 = vadd.f32 %v643, %v644
        %v646 = vrot.slane %v645, 2
        %v647 = vadd.f32 %v645, %v646
        %v648 = vrot.slane %v647, 1
        %v649 = vadd.f32 %v647, %v648
        %v650 = vrcp.pop %v649
        %v651 = vmul.f32 %v598, %v650
        %v652 = vmul.f32 %v600, %v650
        %v653 = vmul.f32 %v602, %v650
        %v654 = vmul.f32 %v604, %v650
        %v655 = vmul.f32 %v606, %v650
        %v656 = vmul.f32 %v608, %v650
        %v657 = vmul.f32 %v610, %v650
        %v658 = vmul.f32 %v612, %v650
        %v659 = vmul.f32 %v614, %v650
        %v660 = vmul.f32 %v616, %v650
        %v661 = vmul.f32 %v618, %v650
        %v662 = vmul.f32 %v620, %v650
        %v663 = vmul.f32 %v622, %v650
        %v664 = vmul.f32 %v624, %v650
        %v665 = vmul.f32 %v626, %v650
        %v666 = vmul.f32 %v628, %v650
        %v667 = vstv %s210
        %v668 = vmul.f32 %v667, %v651
        %v669 = vmul.f32 %v667, %v652
        %v670 = vmul.f32 %v667, %v653
        %v671 = vmul.f32 %v667, %v654
        %v672 = vmul.f32 %v667, %v655
        %v673 = vmul.f32 %v667, %v656
        %v674 = vmul.f32 %v667, %v657
        %v675 = vmul.f32 %v667, %v658
        %v676 = vmul.f32 %v667, %v659
        %v677 = vmul.f32 %v667, %v660
        %v678 = vmul.f32 %v667, %v661
        %v679 = vmul.f32 %v667, %v662
        %v680 = vmul.f32 %v667, %v663
        %v681 = vmul.f32 %v667, %v664
        %v682 = vmul.f32 %v667, %v665
        %v683 = vmul.f32 %v667, %v666
        %v684 = vpack.c.bf16 %v669, %v668
        %v685 = vpack.c.bf16 %v671, %v670
        %v686 = vpack.c.bf16 %v673, %v672
        %v687 = vpack.c.bf16 %v675, %v674
        %v688 = vpack.c.bf16 %v677, %v676
        %v689 = vpack.c.bf16 %v679, %v678
        %v690 = vpack.c.bf16 %v681, %v680
        %v691 = vpack.c.bf16 %v683, %v682
        %v692 = vld [vmem:[%s180] sm:$0xff]
        %v693 = vld [vmem:[%s180 + $0x8] sm:$0xff]
        %v694 = vpack.c.bf16 %v693, %v692
        %v696 = vlaneseq
        %v697 = vshrl.u32 %v696, 7
        %v698 = vsub.s32 0, %v697
        %v699 = vrot.slane %v245, %v698
        %v717 = vunpack.c.l.b16 %v227
        %v718 = vunpack.c.l.b16 %v228
        %v719 = vunpack.c.l.b16 %v229
        %v720 = vunpack.c.l.b16 %v230
        %v721 = vunpack.c.l.b16 %v231
        %v722 = vunpack.c.l.b16 %v232
        %v723 = vunpack.c.l.b16 %v233
        %v724 = vunpack.c.l.b16 %v234
        %v725 = vunpack.c.l.b16 %v235
        %v726 = vunpack.c.l.b16 %v236
        %v727 = vunpack.c.l.b16 %v237
        %v728 = vunpack.c.l.b16 %v238
        %v729 = vunpack.c.l.b16 %v239
        %v730 = vunpack.c.l.b16 %v240
        %v731 = vunpack.c.l.b16 %v241
        %v732 = vunpack.c.l.b16 %v242
        %v733 = vpack.c.b16 %v718, %v717
        %v734 = vpack.c.b16 %v720, %v719
        %v735 = vpack.c.b16 %v722, %v721
        %v736 = vpack.c.b16 %v724, %v723
        %v737 = vpack.c.b16 %v726, %v725
        %v738 = vpack.c.b16 %v728, %v727
        %v739 = vpack.c.b16 %v730, %v729
        %v740 = vpack.c.b16 %v732, %v731
        %749 = vmatprep.subr.bf16.mxu0 0
        %750 = vmatpush1.bf16.msra.mxu0 %v733
        %751 = vmatprep.subr.bf16.mxu0 0
        %752 = vmatpush1.bf16.msra.mxu0 %v734
        %753 = vmatprep.subr.bf16.mxu0 0
        %754 = vmatpush1.bf16.msra.mxu0 %v735
        %755 = vmatprep.subr.bf16.mxu0 0
        %756 = vmatpush1.bf16.msra.mxu0 %v736
        %757 = vmatprep.subr.bf16.mxu0 0
        %758 = vmatpush1.bf16.msra.mxu0 %v737
        %759 = vmatprep.subr.bf16.mxu0 0
        %760 = vmatpush1.bf16.msra.mxu0 %v738
        %761 = vmatprep.subr.bf16.mxu0 0
        %762 = vmatpush1.bf16.msra.mxu0 %v739
        %763 = vmatprep.subr.bf16.mxu0 0
        %764 = vmatpush1.bf16.msra.mxu0 %v740
        %765 = vmatprep.subr.bf16.mxu0 0
        %766 = vmatpush1.bf16.msra.mxu0 0
        %767 = vmatprep.subr.bf16.mxu0 0
        %768 = vmatpush1.bf16.msra.mxu0 0
        %769 = vmatprep.subr.bf16.mxu0 0
        %770 = vmatpush1.bf16.msra.mxu0 0
        %771 = vmatprep.subr.bf16.mxu0 0
        %772 = vmatpush1.bf16.msra.mxu0 0
        %773 = vmatprep.subr.bf16.mxu0 0
        %774 = vmatpush1.bf16.msra.mxu0 0
        %775 = vmatprep.subr.bf16.mxu0 0
        %776 = vmatpush1.bf16.msra.mxu0 0
        %777 = vmatprep.subr.bf16.mxu0 0
        %778 = vmatpush1.bf16.msra.mxu0 0
        %779 = vmatprep.subr.bf16.mxu0 0
        %780 = vmatpush1.bf16.msra.mxu0 0
        %781 = vmatprep.mubr.bf16.mxu0 0
        %782 = vmatmul.mubr.bf16.gmra.mrb[0].mxu0 %v694
        %v783 = vpop.f32.mrb[0].mxu0
        %v784 = vadd.f32 %v699, %v783
        %v785 = vpop.f32.mrb[0].mxu0
        %v786 = vpop.f32.mrb[0].mxu0
        %v787 = vadd.f32 %v699, %v786
        %v788 = vpop.f32.mrb[0].mxu0
        %789 = vdwg.mxu0
        %v790 = vpack.c.bf16 %v787, %v784
        %791 = vmatprep.subr.bf16.mxu0 0
        %792 = vmatpush1.bf16.msra.mxu0 %v684
        %793 = vmatprep.subr.bf16.mxu0 0
        %794 = vmatpush1.bf16.msra.mxu0 %v685
        %795 = vmatprep.subr.bf16.mxu0 0
        %796 = vmatpush1.bf16.msra.mxu0 %v686
        %797 = vmatprep.subr.bf16.mxu0 0
        %798 = vmatpush1.bf16.msra.mxu0 %v687
        %799 = vmatprep.subr.bf16.mxu0 0
        %800 = vmatpush1.bf16.msra.mxu0 %v688
        %801 = vmatprep.subr.bf16.mxu0 0
        %802 = vmatpush1.bf16.msra.mxu0 %v689
        %803 = vmatprep.subr.bf16.mxu0 0
        %804 = vmatpush1.bf16.msra.mxu0 %v690
        %805 = vmatprep.subr.bf16.mxu0 0
        %806 = vmatpush1.bf16.msra.mxu0 %v691
        %807 = vmatprep.subr.bf16.mxu0 0
        %808 = vmatpush1.bf16.msra.mxu0 0
        %809 = vmatprep.subr.bf16.mxu0 0
        %810 = vmatpush1.bf16.msra.mxu0 0
        %811 = vmatprep.subr.bf16.mxu0 0
        %812 = vmatpush1.bf16.msra.mxu0 0
        %813 = vmatprep.subr.bf16.mxu0 0
        %814 = vmatpush1.bf16.msra.mxu0 0
        %815 = vmatprep.subr.bf16.mxu0 0
        %816 = vmatpush1.bf16.msra.mxu0 0
        %817 = vmatprep.subr.bf16.mxu0 0
        %818 = vmatpush1.bf16.msra.mxu0 0
        %819 = vmatprep.subr.bf16.mxu0 0
        %820 = vmatpush1.bf16.msra.mxu0 0
        %821 = vmatprep.subr.bf16.mxu0 0
        %822 = vmatpush1.bf16.msra.mxu0 0
        %823 = vmatprep.mubr.bf16.mxu0 0
        %824 = vmatmul.mubr.bf16.gmra.mrb[0].mxu0 %v790
        %v825 = vpop.f32.mrb[0].mxu0
        %v826 = vadd.f32 0.0, %v825
        %v827 = vpop.f32.mrb[0].mxu0
        %v828 = vpop.f32.mrb[0].mxu0
        %v829 = vadd.f32 0.0, %v828
        %v830 = vpop.f32.mrb[0].mxu0
        %831 = vdwg.mxu0
        %v832 = vadd.f32 %v692, %v826
        %v833 = vadd.f32 %v693, %v829
        %834 = vst [vmem:[%s206] sm:$0xff] %v832
        %835 = vst [vmem:[%s206 + $0x8] sm:$0xff] %v833
        %s836 = scalar_lea.vmem %s180, 16 [#allocation5]
        %v837 = vld [vmem:[%s836] sm:$0xff]
        %v838 = vld [vmem:[%s836 + $0x8] sm:$0xff]
        %v839 = vpack.c.bf16 %v838, %v837
        %840 = vmatprep.subr.bf16.mxu0 %v298
        %841 = vmatpush1.bf16.msra.mxu0 %v297
        %842 = vmatprep.subr.bf16.mxu0 %v300
        %843 = vmatpush1.bf16.msra.mxu0 %v299
        %844 = vmatprep.subr.bf16.mxu0 %v302
        %845 = vmatpush1.bf16.msra.mxu0 %v301
        %846 = vmatprep.subr.bf16.mxu0 %v304
        %847 = vmatpush1.bf16.msra.mxu0 %v303
        %848 = vmatprep.subr.bf16.mxu0 %v306
        %849 = vmatpush1.bf16.msra.mxu0 %v305
        %850 = vmatprep.subr.bf16.mxu0 %v308
        %851 = vmatpush1.bf16.msra.mxu0 %v307
        %852 = vmatprep.subr.bf16.mxu0 %v310
        %853 = vmatpush1.bf16.msra.mxu0 %v309
        %854 = vmatprep.subr.bf16.mxu0 %v312
        %855 = vmatpush1.bf16.msra.mxu0 %v311
        %856 = vmatprep.subr.bf16.mxu0 0
        %857 = vmatpush1.bf16.msra.mxu0 0
        %858 = vmatprep.subr.bf16.mxu0 0
        %859 = vmatpush1.bf16.msra.mxu0 0
        %860 = vmatprep.subr.bf16.mxu0 0
        %861 = vmatpush1.bf16.msra.mxu0 0
        %862 = vmatprep.subr.bf16.mxu0 0
        %863 = vmatpush1.bf16.msra.mxu0 0
        %864 = vmatprep.subr.bf16.mxu0 0
        %865 = vmatpush1.bf16.msra.mxu0 0
        %866 = vmatprep.subr.bf16.mxu0 0
        %867 = vmatpush1.bf16.msra.mxu0 0
        %868 = vmatprep.subr.bf16.mxu0 0
        %869 = vmatpush1.bf16.msra.mxu0 0
        %870 = vmatprep.subr.bf16.mxu0 0
        %871 = vmatpush1.bf16.msra.mxu0 0
        %872 = vmatprep.mubr.bf16.mxu0 0
        %873 = vmatmul.mubr.bf16.gmra.mrb[0].mxu0 %v839
        %v874 = vpop.f32.mrb[0].mxu0
        %v875 = vadd.f32 0.0, %v874
        %v876 = vpop.f32.mrb[0].mxu0
        %v877 = vadd.f32 0.0, %v876
        %v878 = vpop.f32.mrb[0].mxu0
        %v879 = vadd.f32 0.0, %v878
        %v880 = vpop.f32.mrb[0].mxu0
        %v881 = vadd.f32 0.0, %v880
        %882 = vdwg.mxu0
        %v883 = vadd.f32 %v875, %v376
        %v884 = vadd.f32 %v879, %v376
        %v885 = vpack.c.bf16 %v884, %v883
        %v886 = vadd.f32 %v877, %v385
        %v887 = vadd.f32 %v881, %v385
        %v888 = vpack.c.bf16 %v887, %v886
        %889 = vxpose.xlu0.c.b16.start [1/8] %v885, 128
        %890 = vxpose.xlu0.c.b16.cont [2/8] 0, 128
        %891 = vxpose.xlu0.c.b16.cont [3/8] 0, 128
        %892 = vxpose.xlu0.c.b16.cont [4/8] 0, 128
        %893 = vxpose.xlu0.c.b16.cont [5/8] 0, 128
        %894 = vxpose.xlu0.c.b16.cont [6/8] 0, 128
        %895 = vxpose.xlu0.c.b16.cont [7/8] 0, 128
        %896 = vxpose.xlu0.c.b16.end [8/8] 0, 128
        %v897 = vpop.trf.xlu0
        %v898 = vpop.trf.xlu0
        %v899 = vpop.trf.xlu0
        %v900 = vpop.trf.xlu0
        %v901 = vpop.trf.xlu0
        %v902 = vpop.trf.xlu0
        %v903 = vpop.trf.xlu0
        %v904 = vpop.trf.xlu0
        %v906 = vsel %vm406, %v897, 0
        %v909 = vsel %vm406, %v898, 0
        %v912 = vsel %vm406, %v899, 0
        %v915 = vsel %vm406, %v900, 0
        %v918 = vsel %vm406, %v901, 0
        %v921 = vsel %vm406, %v902, 0
        %v924 = vsel %vm406, %v903, 0
        %v927 = vsel %vm406, %v904, 0
        %929 = vmatprep.subr.bf16.mxu0 0
        %930 = vmatpush1.bf16.msra.mxu0 %v888
        %931 = vmatprep.subr.bf16.mxu0 0
        %932 = vmatpush1.bf16.msra.mxu0 0
        %933 = vmatprep.subr.bf16.mxu0 0
        %934 = vmatpush1.bf16.msra.mxu0 0
        %935 = vmatprep.subr.bf16.mxu0 0
        %936 = vmatpush1.bf16.msra.mxu0 0
        %937 = vmatprep.subr.bf16.mxu0 0
        %938 = vmatpush1.bf16.msra.mxu0 0
        %939 = vmatprep.subr.bf16.mxu0 0
        %940 = vmatpush1.bf16.msra.mxu0 0
        %941 = vmatprep.subr.bf16.mxu0 0
        %942 = vmatpush1.bf16.msra.mxu0 0
        %943 = vmatprep.subr.bf16.mxu0 0
        %944 = vmatpush1.bf16.msra.mxu0 0
        %945 = vmatprep.subr.bf16.mxu0 0
        %946 = vmatpush1.bf16.msra.mxu0 0
        %947 = vmatprep.subr.bf16.mxu0 0
        %948 = vmatpush1.bf16.msra.mxu0 0
        %949 = vmatprep.subr.bf16.mxu0 0
        %950 = vmatpush1.bf16.msra.mxu0 0
        %951 = vmatprep.subr.bf16.mxu0 0
        %952 = vmatpush1.bf16.msra.mxu0 0
        %953 = vmatprep.subr.bf16.mxu0 0
        %954 = vmatpush1.bf16.msra.mxu0 0
        %955 = vmatprep.subr.bf16.mxu0 0
        %956 = vmatpush1.bf16.msra.mxu0 0
        %957 = vmatprep.subr.bf16.mxu0 0
        %958 = vmatpush1.bf16.msra.mxu0 0
        %959 = vmatprep.subr.bf16.mxu0 0
        %960 = vmatpush1.bf16.msra.mxu0 0
        %961 = vmatprep.mubr.bf16.mxu0 0
        %962 = vmatmul.mubr.bf16.gmra.mrb[0].mxu0 %v906
        %v963 = vpop.f32.mrb[0].mxu0
        %v964 = vadd.f32 0.0, %v963
        %v965 = vpop.f32.mrb[0].mxu0
        %v966 = vpop.f32.mrb[0].mxu0
        %v967 = vadd.f32 0.0, %v966
        %v968 = vpop.f32.mrb[0].mxu0
        %969 = vmatprep.mubr.bf16.mxu0 0
        %970 = vmatmul.mubr.bf16.gmra.mrb[0].mxu0 %v909
        %v971 = vpop.f32.mrb[0].mxu0
        %v972 = vadd.f32 0.0, %v971
        %v973 = vpop.f32.mrb[0].mxu0
        %v974 = vpop.f32.mrb[0].mxu0
        %v975 = vadd.f32 0.0, %v974
        %v976 = vpop.f32.mrb[0].mxu0
        %977 = vmatprep.mubr.bf16.mxu0 0
        %978 = vmatmul.mubr.bf16.gmra.mrb[0].mxu0 %v912
        %v979 = vpop.f32.mrb[0].mxu0
        %v980 = vadd.f32 0.0, %v979
        %v981 = vpop.f32.mrb[0].mxu0
        %v982 = vpop.f32.mrb[0].mxu0
        %v983 = vadd.f32 0.0, %v982
        %v984 = vpop.f32.mrb[0].mxu0
        %985 = vmatprep.mubr.bf16.mxu0 0
        %986 = vmatmul.mubr.bf16.gmra.mrb[0].mxu0 %v915
        %v987 = vpop.f32.mrb[0].mxu0
        %v988 = vadd.f32 0.0, %v987
        %v989 = vpop.f32.mrb[0].mxu0
        %v990 = vpop.f32.mrb[0].mxu0
        %v991 = vadd.f32 0.0, %v990
        %v992 = vpop.f32.mrb[0].mxu0
        %993 = vmatprep.mubr.bf16.mxu0 0
        %994 = vmatmul.mubr.bf16.gmra.mrb[0].mxu0 %v918
        %v995 = vpop.f32.mrb[0].mxu0
        %v996 = vadd.f32 0.0, %v995
        %v997 = vpop.f32.mrb[0].mxu0
        %v998 = vpop.f32.mrb[0].mxu0
        %v999 = vadd.f32 0.0, %v998
        %v1000 = vpop.f32.mrb[0].mxu0
        %1001 = vmatprep.mubr.bf16.mxu0 0
        %1002 = vmatmul.mubr.bf16.gmra.mrb[0].mxu0 %v921
        %v1003 = vpop.f32.mrb[0].mxu0
        %v1004 = vadd.f32 0.0, %v1003
        %v1005 = vpop.f32.mrb[0].mxu0
        %v1006 = vpop.f32.mrb[0].mxu0
        %v1007 = vadd.f32 0.0, %v1006
        %v1008 = vpop.f32.mrb[0].mxu0
        %1009 = vmatprep.mubr.bf16.mxu0 0
        %1010 = vmatmul.mubr.bf16.gmra.mrb[0].mxu0 %v924
        %v1011 = vpop.f32.mrb[0].mxu0
        %v1012 = vadd.f32 0.0, %v1011
        %v1013 = vpop.f32.mrb[0].mxu0
        %v1014 = vpop.f32.mrb[0].mxu0
        %v1015 = vadd.f32 0.0, %v1014
        %v1016 = vpop.f32.mrb[0].mxu0
        %1017 = vmatprep.mubr.bf16.mxu0 0
        %1018 = vmatmul.mubr.bf16.gmra.mrb[0].mxu0 %v927
        %v1019 = vpop.f32.mrb[0].mxu0
        %v1020 = vadd.f32 0.0, %v1019
        %v1021 = vpop.f32.mrb[0].mxu0
        %v1022 = vpop.f32.mrb[0].mxu0
        %v1023 = vadd.f32 0.0, %v1022
        %v1024 = vpop.f32.mrb[0].mxu0
        %1025 = vdwg.mxu0
        %1026 = vst [vmem:[#allocation2] sm:$0xff] %v964
        %1027 = vst [vmem:[#allocation2 + $0x8] sm:$0xff] %v967
        %1028 = vst [vmem:[#allocation2 + $0x10] sm:$0xff] %v972
        %1029 = vst [vmem:[#allocation2 + $0x18] sm:$0xff] %v975
        %1030 = vst [vmem:[#allocation2 + $0x20] sm:$0xff] %v980
        %1031 = vst [vmem:[#allocation2 + $0x28] sm:$0xff] %v983
        %1032 = vst [vmem:[#allocation2 + $0x30] sm:$0xff] %v988
        %1033 = vst [vmem:[#allocation2 + $0x38] sm:$0xff] %v991
        %1034 = vst [vmem:[#allocation2 + $0x40] sm:$0xff] %v996
        %1035 = vst [vmem:[#allocation2 + $0x48] sm:$0xff] %v999
        %1036 = vst [vmem:[#allocation2 + $0x50] sm:$0xff] %v1004
        %1037 = vst [vmem:[#allocation2 + $0x58] sm:$0xff] %v1007
        %1038 = vst [vmem:[#allocation2 + $0x60] sm:$0xff] %v1012
        %1039 = vst [vmem:[#allocation2 + $0x68] sm:$0xff] %v1015
        %1040 = vst [vmem:[#allocation2 + $0x70] sm:$0xff] %v1020
        %1041 = vst [vmem:[#allocation2 + $0x78] sm:$0xff] %v1023
        %v1042 = vld [vmem:[#allocation2] sm:$0xff]
        %v1043 = vld [vmem:[#allocation2 + $0x8] sm:$0xff]
        %v1044 = vld [vmem:[#allocation2 + $0x10] sm:$0xff]
        %v1045 = vld [vmem:[#allocation2 + $0x18] sm:$0xff]
        %v1046 = vld [vmem:[#allocation2 + $0x20] sm:$0xff]
        %v1047 = vld [vmem:[#allocation2 + $0x28] sm:$0xff]
        %v1048 = vld [vmem:[#allocation2 + $0x30] sm:$0xff]
        %v1049 = vld [vmem:[#allocation2 + $0x38] sm:$0xff]
        %v1050 = vld [vmem:[#allocation2 + $0x40] sm:$0xff]
        %v1051 = vld [vmem:[#allocation2 + $0x48] sm:$0xff]
        %v1052 = vld [vmem:[#allocation2 + $0x50] sm:$0xff]
        %v1053 = vld [vmem:[#allocation2 + $0x58] sm:$0xff]
        %v1054 = vld [vmem:[#allocation2 + $0x60] sm:$0xff]
        %v1055 = vld [vmem:[#allocation2 + $0x68] sm:$0xff]
        %v1056 = vld [vmem:[#allocation2 + $0x70] sm:$0xff]
        %v1057 = vld [vmem:[#allocation2 + $0x78] sm:$0xff]
        %v1058 = vmax.f32 %v1042, %v1046
        %v1059 = vmax.f32 %v1043, %v1047
        %v1060 = vmax.f32 %v1044, %v1048
        %v1061 = vmax.f32 %v1045, %v1049
        %v1062 = vmax.f32 %v1058, %v1050
        %v1063 = vmax.f32 %v1059, %v1051
        %v1064 = vmax.f32 %v1060, %v1052
        %v1065 = vmax.f32 %v1061, %v1053
        %v1066 = vmax.f32 %v1062, %v1054
        %v1067 = vmax.f32 %v1063, %v1055
        %v1068 = vmax.f32 %v1064, %v1056
        %v1069 = vmax.f32 %v1065, %v1057
        %v1070 = vmax.f32 %v1066, %v1067
        %v1071 = vmax.f32 %v1068, %v1069
        %v1072 = vmax.f32 %v1070, %v1071
        %v1073 = vrot.slane %v1072, 4
        %v1074 = vmax.f32 %v1072, %v1073
        %v1075 = vrot.slane %v1074, 2
        %v1076 = vmax.f32 %v1074, %v1075
        %v1077 = vrot.slane %v1076, 1
        %v1078 = vmax.f32 %v1076, %v1077
        %v1079 = vsub.f32 %v1042, %v1078
        %v1080 = vsub.f32 %v1043, %v1078
        %v1081 = vsub.f32 %v1044, %v1078
        %v1082 = vsub.f32 %v1045, %v1078
        %v1083 = vsub.f32 %v1046, %v1078
        %v1084 = vsub.f32 %v1047, %v1078
        %v1085 = vsub.f32 %v1048, %v1078
        %v1086 = vsub.f32 %v1049, %v1078
        %v1087 = vsub.f32 %v1050, %v1078
        %v1088 = vsub.f32 %v1051, %v1078
        %v1089 = vsub.f32 %v1052, %v1078
        %v1090 = vsub.f32 %v1053, %v1078
        %v1091 = vsub.f32 %v1054, %v1078
        %v1092 = vsub.f32 %v1055, %v1078
        %v1093 = vsub.f32 %v1056, %v1078
        %v1094 = vsub.f32 %v1057, %v1078
        %v1095 = vmul.f32 %v1079, 1.442695
        %v1096 = vpow.pop %v1095
        %v1097 = vmul.f32 %v1080, 1.442695
        %v1098 = vpow.pop %v1097
        %v1099 = vmul.f32 %v1081, 1.442695
        %v1100 = vpow.pop %v1099
        %v1101 = vmul.f32 %v1082, 1.442695
        %v1102 = vpow.pop %v1101
        %v1103 = vmul.f32 %v1083, 1.442695
        %v1104 = vpow.pop %v1103
        %v1105 = vmul.f32 %v1084, 1.442695
        %v1106 = vpow.pop %v1105
        %v1107 = vmul.f32 %v1085, 1.442695
        %v1108 = vpow.pop %v1107
        %v1109 = vmul.f32 %v1086, 1.442695
        %v1110 = vpow.pop %v1109
        %v1111 = vmul.f32 %v1087, 1.442695
        %v1112 = vpow.pop %v1111
        %v1113 = vmul.f32 %v1088, 1.442695
        %v1114 = vpow.pop %v1113
        %v1115 = vmul.f32 %v1089, 1.442695
        %v1116 = vpow.pop %v1115
        %v1117 = vmul.f32 %v1090, 1.442695
        %v1118 = vpow.pop %v1117
        %v1119 = vmul.f32 %v1091, 1.442695
        %v1120 = vpow.pop %v1119
        %v1121 = vmul.f32 %v1092, 1.442695
        %v1122 = vpow.pop %v1121
        %v1123 = vmul.f32 %v1093, 1.442695
        %v1124 = vpow.pop %v1123
        %v1125 = vmul.f32 %v1094, 1.442695
        %v1126 = vpow.pop %v1125
        %v1127 = vadd.f32 %v1096, %v1098
        %v1128 = vadd.f32 %v1127, %v1100
        %v1129 = vadd.f32 %v1128, %v1102
        %v1130 = vadd.f32 %v1129, %v1104
        %v1131 = vadd.f32 %v1130, %v1106
        %v1132 = vadd.f32 %v1131, %v1108
        %v1133 = vadd.f32 %v1132, %v1110
        %v1134 = vadd.f32 %v1133, %v1112
        %v1135 = vadd.f32 %v1134, %v1114
        %v1136 = vadd.f32 %v1135, %v1116
        %v1137 = vadd.f32 %v1136, %v1118
        %v1138 = vadd.f32 %v1137, %v1120
        %v1139 = vadd.f32 %v1138, %v1122
        %v1140 = vadd.f32 %v1139, %v1124
        %v1141 = vadd.f32 %v1140, %v1126
        %v1142 = vrot.slane %v1141, 4
        %v1143 = vadd.f32 %v1141, %v1142
        %v1144 = vrot.slane %v1143, 2
        %v1145 = vadd.f32 %v1143, %v1144
        %v1146 = vrot.slane %v1145, 1
        %v1147 = vadd.f32 %v1145, %v1146
        %v1148 = vrcp.pop %v1147
        %v1149 = vmul.f32 %v1096, %v1148
        %v1150 = vmul.f32 %v1098, %v1148
        %v1151 = vmul.f32 %v1100, %v1148
        %v1152 = vmul.f32 %v1102, %v1148
        %v1153 = vmul.f32 %v1104, %v1148
        %v1154 = vmul.f32 %v1106, %v1148
        %v1155 = vmul.f32 %v1108, %v1148
        %v1156 = vmul.f32 %v1110, %v1148
        %v1157 = vmul.f32 %v1112, %v1148
        %v1158 = vmul.f32 %v1114, %v1148
        %v1159 = vmul.f32 %v1116, %v1148
        %v1160 = vmul.f32 %v1118, %v1148
        %v1161 = vmul.f32 %v1120, %v1148
        %v1162 = vmul.f32 %v1122, %v1148
        %v1163 = vmul.f32 %v1124, %v1148
        %v1164 = vmul.f32 %v1126, %v1148
        %v1165 = vmul.f32 %v667, %v1149
        %v1166 = vmul.f32 %v667, %v1150
        %v1167 = vmul.f32 %v667, %v1151
        %v1168 = vmul.f32 %v667, %v1152
        %v1169 = vmul.f32 %v667, %v1153
        %v1170 = vmul.f32 %v667, %v1154
        %v1171 = vmul.f32 %v667, %v1155
        %v1172 = vmul.f32 %v667, %v1156
        %v1173 = vmul.f32 %v667, %v1157
        %v1174 = vmul.f32 %v667, %v1158
        %v1175 = vmul.f32 %v667, %v1159
        %v1176 = vmul.f32 %v667, %v1160
        %v1177 = vmul.f32 %v667, %v1161
        %v1178 = vmul.f32 %v667, %v1162
        %v1179 = vmul.f32 %v667, %v1163
        %v1180 = vmul.f32 %v667, %v1164
        %v1181 = vpack.c.bf16 %v1166, %v1165
        %v1182 = vpack.c.bf16 %v1168, %v1167
        %v1183 = vpack.c.bf16 %v1170, %v1169
        %v1184 = vpack.c.bf16 %v1172, %v1171
        %v1185 = vpack.c.bf16 %v1174, %v1173
        %v1186 = vpack.c.bf16 %v1176, %v1175
        %v1187 = vpack.c.bf16 %v1178, %v1177
        %v1188 = vpack.c.bf16 %v1180, %v1179
        %v1189 = vld [vmem:[%s836] sm:$0xff]
        %v1190 = vld [vmem:[%s836 + $0x8] sm:$0xff]
        %v1191 = vpack.c.bf16 %v1190, %v1189
        %1192 = vmatprep.subr.bf16.mxu0 0
        %1193 = vmatpush1.bf16.msra.mxu0 %v733
        %1194 = vmatprep.subr.bf16.mxu0 0
        %1195 = vmatpush1.bf16.msra.mxu0 %v734
        %1196 = vmatprep.subr.bf16.mxu0 0
        %1197 = vmatpush1.bf16.msra.mxu0 %v735
        %1198 = vmatprep.subr.bf16.mxu0 0
        %1199 = vmatpush1.bf16.msra.mxu0 %v736
        %1200 = vmatprep.subr.bf16.mxu0 0
        %1201 = vmatpush1.bf16.msra.mxu0 %v737
        %1202 = vmatprep.subr.bf16.mxu0 0
        %1203 = vmatpush1.bf16.msra.mxu0 %v738
        %1204 = vmatprep.subr.bf16.mxu0 0
        %1205 = vmatpush1.bf16.msra.mxu0 %v739
        %1206 = vmatprep.subr.bf16.mxu0 0
        %1207 = vmatpush1.bf16.msra.mxu0 %v740
        %1208 = vmatprep.subr.bf16.mxu0 0
        %1209 = vmatpush1.bf16.msra.mxu0 0
        %1210 = vmatprep.subr.bf16.mxu0 0
        %1211 = vmatpush1.bf16.msra.mxu0 0
        %1212 = vmatprep.subr.bf16.mxu0 0
        %1213 = vmatpush1.bf16.msra.mxu0 0
        %1214 = vmatprep.subr.bf16.mxu0 0
        %1215 = vmatpush1.bf16.msra.mxu0 0
        %1216 = vmatprep.subr.bf16.mxu0 0
        %1217 = vmatpush1.bf16.msra.mxu0 0
        %1218 = vmatprep.subr.bf16.mxu0 0
        %1219 = vmatpush1.bf16.msra.mxu0 0
        %1220 = vmatprep.subr.bf16.mxu0 0
        %1221 = vmatpush1.bf16.msra.mxu0 0
        %1222 = vmatprep.subr.bf16.mxu0 0
        %1223 = vmatpush1.bf16.msra.mxu0 0
        %1224 = vmatprep.mubr.bf16.mxu0 0
        %1225 = vmatmul.mubr.bf16.gmra.mrb[0].mxu0 %v1191
        %v1226 = vpop.f32.mrb[0].mxu0
        %v1227 = vadd.f32 %v699, %v1226
        %v1228 = vpop.f32.mrb[0].mxu0
        %v1229 = vpop.f32.mrb[0].mxu0
        %v1230 = vadd.f32 %v699, %v1229
        %v1231 = vpop.f32.mrb[0].mxu0
        %1232 = vdwg.mxu0
        %v1233 = vpack.c.bf16 %v1230, %v1227
        %1234 = vmatprep.subr.bf16.mxu0 0
        %1235 = vmatpush1.bf16.msra.mxu0 %v1181
        %1236 = vmatprep.subr.bf16.mxu0 0
        %1237 = vmatpush1.bf16.msra.mxu0 %v1182
        %1238 = vmatprep.subr.bf16.mxu0 0
        %1239 = vmatpush1.bf16.msra.mxu0 %v1183
        %1240 = vmatprep.subr.bf16.mxu0 0
        %1241 = vmatpush1.bf16.msra.mxu0 %v1184
        %1242 = vmatprep.subr.bf16.mxu0 0
        %1243 = vmatpush1.bf16.msra.mxu0 %v1185
        %1244 = vmatprep.subr.bf16.mxu0 0
        %1245 = vmatpush1.bf16.msra.mxu0 %v1186
        %1246 = vmatprep.subr.bf16.mxu0 0
        %1247 = vmatpush1.bf16.msra.mxu0 %v1187
        %1248 = vmatprep.subr.bf16.mxu0 0
        %1249 = vmatpush1.bf16.msra.mxu0 %v1188
        %1250 = vmatprep.subr.bf16.mxu0 0
        %1251 = vmatpush1.bf16.msra.mxu0 0
        %1252 = vmatprep.subr.bf16.mxu0 0
        %1253 = vmatpush1.bf16.msra.mxu0 0
        %1254 = vmatprep.subr.bf16.mxu0 0
        %1255 = vmatpush1.bf16.msra.mxu0 0
        %1256 = vmatprep.subr.bf16.mxu0 0
        %1257 = vmatpush1.bf16.msra.mxu0 0
        %1258 = vmatprep.subr.bf16.mxu0 0
        %1259 = vmatpush1.bf16.msra.mxu0 0
        %1260 = vmatprep.subr.bf16.mxu0 0
        %1261 = vmatpush1.bf16.msra.mxu0 0
        %1262 = vmatprep.subr.bf16.mxu0 0
        %1263 = vmatpush1.bf16.msra.mxu0 0
        %1264 = vmatprep.subr.bf16.mxu0 0
        %1265 = vmatpush1.bf16.msra.mxu0 0
        %1266 = vmatprep.mubr.bf16.mxu0 0
        %1267 = vmatmul.mubr.bf16.gmra.mrb[0].mxu0 %v1233
        %v1268 = vpop.f32.mrb[0].mxu0
        %v1269 = vadd.f32 0.0, %v1268
        %v1270 = vpop.f32.mrb[0].mxu0
        %v1271 = vpop.f32.mrb[0].mxu0
        %v1272 = vadd.f32 0.0, %v1271
        %v1273 = vpop.f32.mrb[0].mxu0
        %1274 = vdwg.mxu0
        %v1275 = vadd.f32 %v1189, %v1269
        %v1276 = vadd.f32 %v1190, %v1272
        %s1277 = scalar_lea.vmem %s206, 16 [#allocation10]
        %1278 = vst [vmem:[%s1277] sm:$0xff] %v1275
        %1279 = vst [vmem:[%s1277 + $0x8] sm:$0xff] %v1276
        %s1280 = sand.u32 %s99, 1
        %s1281 = scalar_lea.sflag [#allocation7], %s1280
        %s1282 = sand.u32 %s99, 1
        %s1283 = smul.addr %s1282, 32
        %s1284 = scalar_lea.vmem [#allocation10], %s1283
        // Predicated region
        $region41: #{tpu_custom_call.1} parent=31 // pred_check
          %p1285 = pneg %p109
        $region42: #{tpu_custom_call.1} parent=31 // pred_check_branch
          %1287 = sbr.rel (%p1285) target = $region44
        $region43: #{tpu_custom_call.1} parent=31 // pred_region
          %s1288 = smul.u32 2, %s23
          %s1290 = ssub.s32 512, 512
          %1291 = vsyncadd %s1281, %s1290
          %s1292 = smul.addr %s1288, 2
          %s1293 = smul.addr %s1292, 128
          %s1294 = scalar_lea.hbm %s4, %s1293
          %s1295 = sshll.u32 %s1284, 4
          %s1296 = int_to_ptr.vmem [resolvable:$true] %s1295
          %1301 = dma.vmem_to_hbm [thread:$0]  %s1296, 512, %s1294, %s1281, 128, 128, 8
        $region44: #{tpu_custom_call.1} parent=31 // pred_fallthru
          _
      $region32: #{tpu_custom_call.1} parent=5 // pred_fallthru
        _
      %p1302 = scmp.le.s32.totalorder 2, %s18
      // Predicated region
      $region45: #{tpu_custom_call.1} parent=5 // pred_check
        %p1303 = pneg %p1302
      $region46: #{tpu_custom_call.1} parent=5 // pred_check_branch
        %1305 = sbr.rel (%p1303) target = $region48
      $region47: #{tpu_custom_call.1} parent=5 // pred_region
        %s1306 = ssub.s32 %s18, 2
        // Predicated region
        $region49: #{tpu_custom_call.1} parent=47 // pred_check
          %p1307 = pneg %p115
        $region50: #{tpu_custom_call.1} parent=47 // pred_check_branch
          %1309 = sbr.rel (%p1307) target = $region52
        $region51: #{tpu_custom_call.1} parent=47 // pred_region
          %s1310 = sand.u32 %s100, 1
          %s1311 = scalar_lea.sflag [#allocation7], %s1310
          %s1312 = sand.u32 %s100, 1
          %s1313 = smul.addr %s1312, 32
          %s1314 = scalar_lea.vmem [#allocation10], %s1313
          %1315 = dma.done %s1311, 512
        $region52: #{tpu_custom_call.1} parent=47 // pred_fallthru
          _
      $region48: #{tpu_custom_call.1} parent=5 // pred_fallthru
        _
    $region6: #{tpu_custom_call.1} parent=1 // loop_footer
      %s22 = sadd.s32 1, %s18
    $region7: #{tpu_custom_call.1} parent=1 // loop_footer_branch
      %17 = sbr.rel target = $region3
    $region8: #{tpu_custom_call.1} parent=1 // loop_exit
      _
    %1316 = vsyncpa [#allocation6], 1
    %s1317 = scalar_lea.sflag [#allocation6], 1
    %1318 = vsyncpa %s1317, 1
    %1319 = vsyncpa [#allocation9], 1
    %1320 = vsyncpa [#allocation7], 1
    %s1321 = scalar_lea.sflag [#allocation7], 1
    %1322 = vsyncpa %s1321, 1

</llo_original>
